<compile_context>
chip_gen: v6e
topology: v6e:2x2x1
jax: 0.10.0
libtpu: 0.0.40
codegen_flags: <defaults>
</compile_context>

<pallas_src>
import math

import jax
import jax.numpy as jnp
from jax.experimental import pallas as pl
from jax.experimental.pallas import tpu as pltpu  # noqa: F401  (TPU backend)

# ---- real (logical) sizes of the synthetic backbone --------------------------------
B, S, H = 2, 16, 32          # batch, seq_len, hidden_size
NH, HD = 4, 8                # num heads, head dim (NH * HD == H)
FFN = 64                     # intermediate size
VOCAB = 64
# ---- padded (lane-native) sizes -----------------------------------------------------
HP = 128                     # hidden padded to a full vreg lane width
FP = 128                     # FFN intermediate padded
OUT_L = 128                  # output lane width (col 0 = start, col 1 = end)
BS = B * S

NEG_FILL = -1.0e9
LN_EPS = 1e-12


def _pad2(w, rows, cols):
    """Place a real-sized 2-D block into a zero-padded (rows, cols) f32 array."""
    out = jnp.zeros((rows, cols), jnp.float32)
    return out.at[: w.shape[0], : w.shape[1]].set(w.astype(jnp.float32))


def qa_kernel(x_ref, bias_ref, fill_ref, hmask_ref,
              ln0g_ref, ln0b_ref,
              wq_ref, bq_ref, wk_ref, bk_ref, wv_ref, bv_ref, wo_ref, bo_ref,
              ln1g_ref, ln1b_ref,
              w1_ref, b1_ref, w2_ref, b2_ref,
              ln2g_ref, ln2b_ref,
              wqa_ref, bqa_ref,
              out_ref):
    # lane mask selecting the H real hidden columns out of the HP padded lanes
    col = jax.lax.broadcasted_iota(jnp.int32, (1, HP), 1)
    colmask = (col < H).astype(jnp.float32)

    def layernorm(y, g, b):
        # Padded lanes of y are exactly 0, so sum(y)/H is the true mean; mask the
        # centered values so pad lanes do not pollute the variance. Gains/biases are
        # zero-padded, so pad lanes stay exactly 0 after the layernorm.
        mu = jnp.sum(y, axis=-1, keepdims=True) * (1.0 / H)
        yc = (y - mu) * colmask
        var = jnp.sum(yc * yc, axis=-1, keepdims=True) * (1.0 / H)
        return yc * jax.lax.rsqrt(var + LN_EPS) * g + b

    def mm(a, w_ref):
        # bf16 operands on the MXU, f32 accumulation; elementwise math stays in f32.
        return jnp.dot(a.astype(jnp.bfloat16), w_ref[...],
                       preferred_element_type=jnp.float32)

    x = layernorm(x_ref[...], ln0g_ref[...], ln0b_ref[...])          # [BS, HP] f32

    # ---- self attention: heads stacked on the sublane axis (no 8-lane slices) ----
    q = mm(x, wq_ref) + bq_ref[...]
    k = mm(x, wk_ref) + bk_ref[...]
    v = mm(x, wv_ref) + bv_ref[...]

    hm = hmask_ref[...]                                               # [NH*BS, HP]
    # Row h*BS + t is query token t restricted to head h's columns.
    qs = jnp.concatenate([q] * NH, axis=0) * hm                       # [NH*BS, HP]
    sc = jnp.einsum("nh,mh->nm",
                    qs.astype(jnp.bfloat16), k.astype(jnp.bfloat16),
                    preferred_element_type=jnp.float32)               # [NH*BS, BS]
    # additive mask (cross-batch + padded keys) applied in f32
    sc = sc * (1.0 / math.sqrt(HD)) + bias_ref[...]
    # Rows for padded query tokens see only -1e9-masked keys of other batches but keep
    # their own batch's valid keys; they are overwritten by NEG_FILL at the end, so a
    # uniform/ordinary softmax here is intentional, not a bug.
    sc = sc - jnp.max(sc, axis=-1, keepdims=True)
    p = jnp.exp(sc)
    p = p * pl.reciprocal(jnp.sum(p, axis=-1, keepdims=True), approx=True)
    ctx_s = jnp.dot(p.astype(jnp.bfloat16), v.astype(jnp.bfloat16),
                    preferred_element_type=jnp.float32) * hm          # [NH*BS, HP]
    # fold heads back onto the hidden axis (tile-aligned static slices, no concat)
    ctx = ctx_s[0:BS]
    for h in range(1, NH):
        ctx = ctx + ctx_s[h * BS:(h + 1) * BS]                        # [BS, HP]

    attn = mm(ctx, wo_ref) + bo_ref[...]
    x = layernorm(x + attn, ln1g_ref[...], ln1b_ref[...])

    # ---- feed forward ----
    # TODO(synk): HF BERT uses the exact erf GELU; tanh approximation used here.
    hdn = jax.nn.gelu(mm(x, w1_ref) + b1_ref[...], approximate=True)
    ffn = mm(hdn, w2_ref) + b2_ref[...]
    x = layernorm(x + ffn, ln2g_ref[...], ln2b_ref[...])

    # ---- start/end classifiers + masked_fill, written lane-dense ----
    logits = mm(x, wqa_ref) + bqa_ref[...]                            # [BS, OUT_L]; col0=start, col1=end
    out_ref[...] = jnp.where(fill_ref[...] > 0.5, logits, NEG_FILL)


def init_params(key):
    ks = jax.random.split(key, 10)
    n = lambda k, shp: 0.02 * jax.random.normal(k, shp, dtype=jnp.float32)
    p = {
        "word_emb": n(ks[0], (VOCAB, H)),
        "pos_emb":  n(ks[1], (S, H)),
        "type_emb": n(ks[2], (2, H)),
        # LayerNorm params zero-padded past H so padded lanes stay exactly 0.
        "ln0g": _pad2(jnp.ones((1, H)), 1, HP), "ln0b": jnp.zeros((1, HP), jnp.float32),
        "wq": _pad2(n(ks[3], (H, H)), HP, HP).astype(jnp.bfloat16), "bq": jnp.zeros((1, HP), jnp.float32),
        "wk": _pad2(n(ks[4], (H, H)), HP, HP).astype(jnp.bfloat16), "bk": jnp.zeros((1, HP), jnp.float32),
        "wv": _pad2(n(ks[5], (H, H)), HP, HP).astype(jnp.bfloat16), "bv": jnp.zeros((1, HP), jnp.float32),
        "wo": _pad2(n(ks[6], (H, H)), HP, HP).astype(jnp.bfloat16), "bo": jnp.zeros((1, HP), jnp.float32),
        "ln1g": _pad2(jnp.ones((1, H)), 1, HP), "ln1b": jnp.zeros((1, HP), jnp.float32),
        "w1": _pad2(n(ks[7], (H, FFN)), HP, FP).astype(jnp.bfloat16), "b1": jnp.zeros((1, FP), jnp.float32),
        "w2": _pad2(n(ks[8], (FFN, H)), FP, HP).astype(jnp.bfloat16), "b2": jnp.zeros((1, HP), jnp.float32),
        "ln2g": _pad2(jnp.ones((1, H)), 1, HP), "ln2b": jnp.zeros((1, HP), jnp.float32),
        # start_classifier / end_classifier packed column-wise into a lane-dense weight
        "wqa": _pad2(n(ks[9], (H, 2)), HP, OUT_L).astype(jnp.bfloat16),
        "bqa": jnp.zeros((1, OUT_L), jnp.float32),
    }
    return p


def _head_mask():
    hm = jnp.zeros((NH, HP), jnp.float32)
    for h in range(NH):
        hm = hm.at[h, h * HD:(h + 1) * HD].set(1.0)
    return jnp.repeat(hm, BS, axis=0)          # [NH*BS, HP], row h*BS + t = mask of head h


_WEIGHT_NAMES = ["ln0g", "ln0b",
                 "wq", "bq", "wk", "bk", "wv", "bv", "wo", "bo",
                 "ln1g", "ln1b",
                 "w1", "b1", "w2", "b2",
                 "ln2g", "ln2b",
                 "wqa", "bqa"]


def qa_forward(input_ids, attention_mask, token_type_ids, params):
    # ---- glue: embedding gather + mask preparation (plain JAX) ----
    emb = (params["word_emb"][input_ids]
           + params["pos_emb"][None, :, :]
           + params["type_emb"][token_type_ids]).astype(jnp.float32)       # [B, S, H]
    x = _pad2(emb.reshape(BS, H), BS, HP)                                   # [BS, HP]

    am = attention_mask.astype(jnp.float32)                                 # [B, S]
    key_valid = am.reshape(1, BS)                                           # key m -> token (m//S, m%S)
    same_batch = (jnp.arange(B)[:, None] == (jnp.arange(BS)[None, :] // S)).astype(jnp.float32)
    bias_bm = (same_batch * key_valid - 1.0) * 1e9                          # [B, BS]: 0 keep / -1e9 drop
    row_b = (jnp.arange(NH * BS) % BS) // S                                 # batch of each stacked row
    attn_bias = bias_bm[row_b]                                              # [NH*BS, BS]
    fill_mask = am.reshape(BS, 1)                                           # [BS, 1] for masked_fill
    hmask = _head_mask()                                                    # [NH*BS, HP]

    weights = [params[name] for name in _WEIGHT_NAMES]

    # Single kernel invocation (empty grid): whole batch processed at once, all operands
    # as full VMEM blocks (no per-step overhead, no double-buffered weight copies).
    out = pl.pallas_call(
        qa_kernel,
        out_shape=jax.ShapeDtypeStruct((BS, OUT_L), jnp.float32),
    )(x, attn_bias, fill_mask, hmask, *weights)

    start_logits = out[:, 0].reshape(B, S)
    end_logits = out[:, 1].reshape(B, S)
    return start_logits, end_logits


if __name__ == "__main__":
    key = jax.random.PRNGKey(0)
    k_ids, k_params = jax.random.split(key)

    input_ids = jax.random.randint(k_ids, (B, S), 0, VOCAB, dtype=jnp.int32)
    token_type_ids = jnp.zeros((B, S), dtype=jnp.int32)
    # batch 0 fully valid, batch 1 has 4 padding tokens at the end
    valid_lens = jnp.array([[S], [S - 4]], dtype=jnp.int32)
    attention_mask = (jnp.arange(S)[None, :] < valid_lens).astype(jnp.int32)

    params = init_params(k_params)

    start_logits, end_logits = qa_forward(input_ids, attention_mask, token_type_ids, params)
    jax.block_until_ready((start_logits, end_logits))

    assert start_logits.shape == (B, S) and end_logits.shape == (B, S)
    # padded positions must be filled with -1e9
    assert bool(jnp.all(start_logits[1, S - 4:] == NEG_FILL))
    assert bool(jnp.all(end_logits[1, S - 4:] == NEG_FILL))
    assert bool(jnp.all(jnp.isfinite(start_logits[0])))
    assert bool(jnp.all(jnp.isfinite(end_logits[0])))
    print("KERNEL_OK")
</pallas_src>

<mosaic_0001>
module attributes {stable_mosaic.version = 11 : i64} {
  func.func @qa_kernel(%arg0: memref<32x128xf32, #tpu.memory_space<vmem>>, %arg1: memref<128x32xf32, #tpu.memory_space<vmem>>, %arg2: memref<32x1xf32, #tpu.memory_space<vmem>>, %arg3: memref<128x128xf32, #tpu.memory_space<vmem>>, %arg4: memref<1x128xf32, #tpu.memory_space<vmem>>, %arg5: memref<1x128xf32, #tpu.memory_space<vmem>>, %arg6: memref<128x128xbf16, #tpu.memory_space<vmem>>, %arg7: memref<1x128xf32, #tpu.memory_space<vmem>>, %arg8: memref<128x128xbf16, #tpu.memory_space<vmem>>, %arg9: memref<1x128xf32, #tpu.memory_space<vmem>>, %arg10: memref<128x128xbf16, #tpu.memory_space<vmem>>, %arg11: memref<1x128xf32, #tpu.memory_space<vmem>>, %arg12: memref<128x128xbf16, #tpu.memory_space<vmem>>, %arg13: memref<1x128xf32, #tpu.memory_space<vmem>>, %arg14: memref<1x128xf32, #tpu.memory_space<vmem>>, %arg15: memref<1x128xf32, #tpu.memory_space<vmem>>, %arg16: memref<128x128xbf16, #tpu.memory_space<vmem>>, %arg17: memref<1x128xf32, #tpu.memory_space<vmem>>, %arg18: memref<128x128xbf16, #tpu.memory_space<vmem>>, %arg19: memref<1x128xf32, #tpu.memory_space<vmem>>, %arg20: memref<1x128xf32, #tpu.memory_space<vmem>>, %arg21: memref<1x128xf32, #tpu.memory_space<vmem>>, %arg22: memref<128x128xbf16, #tpu.memory_space<vmem>>, %arg23: memref<1x128xf32, #tpu.memory_space<vmem>>, %arg24: memref<32x128xf32, #tpu.memory_space<vmem>>) attributes {dimension_semantics = [], scalar_prefetch = 0 : i64, scratch_operands = 0 : i64, tpu.core_type = #tpu.core_type<tc>} {
    %0 = tpu.iota {dimensions = array<i32: 1>} : vector<1x128xi32>
    %c32_i32 = arith.constant 32 : i32
    %1 = vector.broadcast %c32_i32 : i32 to vector<1x128xi32>
    %2 = arith.cmpi slt, %0, %1 : vector<1x128xi32>
    %3 = arith.extui %2 : vector<1x128xi1> to vector<1x128xi32>
    %4 = arith.sitofp %3 : vector<1x128xi32> to vector<1x128xf32>
    %c0 = arith.constant 0 : index
    %c0_0 = arith.constant 0 : index
    %5 = vector.load %arg0[%c0, %c0_0] : memref<32x128xf32, #tpu.memory_space<vmem>>, vector<32x128xf32>
    %c0_1 = arith.constant 0 : index
    %c0_2 = arith.constant 0 : index
    %6 = vector.load %arg4[%c0_1, %c0_2] : memref<1x128xf32, #tpu.memory_space<vmem>>, vector<1x128xf32>
    %c0_3 = arith.constant 0 : index
    %c0_4 = arith.constant 0 : index
    %7 = vector.load %arg5[%c0_3, %c0_4] : memref<1x128xf32, #tpu.memory_space<vmem>>, vector<1x128xf32>
    %cst = arith.constant dense<0.000000e+00> : vector<32xf32>
    %8 = vector.multi_reduction <add>, %5, %cst [1] : vector<32x128xf32> to vector<32xf32>
    %9 = vector.shape_cast %8 : vector<32xf32> to vector<32x1xf32>
    %cst_5 = arith.constant 3.125000e-02 : f32
    %10 = vector.broadcast %cst_5 : f32 to vector<32x1xf32>
    %11 = arith.mulf %9, %10 : vector<32x1xf32>
    %12 = vector.broadcast %11 : vector<32x1xf32> to vector<32x128xf32>
    %13 = arith.subf %5, %12 : vector<32x128xf32>
    %14 = vector.broadcast %4 : vector<1x128xf32> to vector<32x128xf32>
    %15 = arith.mulf %13, %14 : vector<32x128xf32>
    %16 = arith.mulf %15, %15 : vector<32x128xf32>
    %cst_6 = arith.constant dense<0.000000e+00> : vector<32xf32>
    %17 = vector.multi_reduction <add>, %16, %cst_6 [1] : vector<32x128xf32> to vector<32xf32>
    %18 = vector.shape_cast %17 : vector<32xf32> to vector<32x1xf32>
    %cst_7 = arith.constant 3.125000e-02 : f32
    %19 = vector.broadcast %cst_7 : f32 to vector<32x1xf32>
    %20 = arith.mulf %18, %19 : vector<32x1xf32>
    %cst_8 = arith.constant 9.99999996E-13 : f32
    %21 = vector.broadcast %cst_8 : f32 to vector<32x1xf32>
    %22 = arith.addf %20, %21 : vector<32x1xf32>
    %23 = math.rsqrt %22 : vector<32x1xf32>
    %24 = vector.broadcast %23 : vector<32x1xf32> to vector<32x128xf32>
    %25 = arith.mulf %15, %24 : vector<32x128xf32>
    %26 = vector.broadcast %6 : vector<1x128xf32> to vector<32x128xf32>
    %27 = arith.mulf %25, %26 : vector<32x128xf32>
    %28 = vector.broadcast %7 : vector<1x128xf32> to vector<32x128xf32>
    %29 = arith.addf %27, %28 : vector<32x128xf32>
    %30 = arith.truncf %29 : vector<32x128xf32> to vector<32x128xbf16>
    %c0_9 = arith.constant 0 : index
    %c0_10 = arith.constant 0 : index
    %31 = vector.load %arg6[%c0_9, %c0_10] : memref<128x128xbf16, #tpu.memory_space<vmem>>, vector<128x128xbf16>
    %cst_11 = arith.constant dense<0.000000e+00> : vector<32x128xf32>
    %32 = tpu.matmul %30, %31, %cst_11 {dimension_numbers = #tpu.dot_dimension_numbers<[1], [0], [0], [1], [0, 0, 1, 1], [], []>} : vector<32x128xbf16>, vector<128x128xbf16>, vector<32x128xf32> -> vector<32x128xf32>
    %c0_12 = arith.constant 0 : index
    %c0_13 = arith.constant 0 : index
    %33 = vector.load %arg7[%c0_12, %c0_13] : memref<1x128xf32, #tpu.memory_space<vmem>>, vector<1x128xf32>
    %34 = vector.broadcast %33 : vector<1x128xf32> to vector<32x128xf32>
    %35 = arith.addf %32, %34 : vector<32x128xf32>
    %36 = arith.truncf %29 : vector<32x128xf32> to vector<32x128xbf16>
    %c0_14 = arith.constant 0 : index
    %c0_15 = arith.constant 0 : index
    %37 = vector.load %arg8[%c0_14, %c0_15] : memref<128x128xbf16, #tpu.memory_space<vmem>>, vector<128x128xbf16>
    %cst_16 = arith.constant dense<0.000000e+00> : vector<32x128xf32>
    %38 = tpu.matmul %36, %37, %cst_16 {dimension_numbers = #tpu.dot_dimension_numbers<[1], [0], [0], [1], [0, 0, 1, 1], [], []>} : vector<32x128xbf16>, vector<128x128xbf16>, vector<32x128xf32> -> vector<32x128xf32>
    %c0_17 = arith.constant 0 : index
    %c0_18 = arith.constant 0 : index
    %39 = vector.load %arg9[%c0_17, %c0_18] : memref<1x128xf32, #tpu.memory_space<vmem>>, vector<1x128xf32>
    %40 = vector.broadcast %39 : vector<1x128xf32> to vector<32x128xf32>
    %41 = arith.addf %38, %40 : vector<32x128xf32>
    %42 = arith.truncf %29 : vector<32x128xf32> to vector<32x128xbf16>
    %c0_19 = arith.constant 0 : index
    %c0_20 = arith.constant 0 : index
    %43 = vector.load %arg10[%c0_19, %c0_20] : memref<128x128xbf16, #tpu.memory_space<vmem>>, vector<128x128xbf16>
    %cst_21 = arith.constant dense<0.000000e+00> : vector<32x128xf32>
    %44 = tpu.matmul %42, %43, %cst_21 {dimension_numbers = #tpu.dot_dimension_numbers<[1], [0], [0], [1], [0, 0, 1, 1], [], []>} : vector<32x128xbf16>, vector<128x128xbf16>, vector<32x128xf32> -> vector<32x128xf32>
    %c0_22 = arith.constant 0 : index
    %c0_23 = arith.constant 0 : index
    %45 = vector.load %arg11[%c0_22, %c0_23] : memref<1x128xf32, #tpu.memory_space<vmem>>, vector<1x128xf32>
    %46 = vector.broadcast %45 : vector<1x128xf32> to vector<32x128xf32>
    %47 = arith.addf %44, %46 : vector<32x128xf32>
    %c0_24 = arith.constant 0 : index
    %c0_25 = arith.constant 0 : index
    %48 = vector.load %arg3[%c0_24, %c0_25] : memref<128x128xf32, #tpu.memory_space<vmem>>, vector<128x128xf32>
    %49 = tpu.concatenate %35, %35, %35, %35 in 0 : vector<32x128xf32>, vector<32x128xf32>, vector<32x128xf32>, vector<32x128xf32> -> vector<128x128xf32>
    %50 = arith.mulf %49, %48 : vector<128x128xf32>
    %51 = arith.truncf %50 : vector<128x128xf32> to vector<128x128xbf16>
    %52 = arith.truncf %41 : vector<32x128xf32> to vector<32x128xbf16>
    "tpu.trace_start"() <{level = 10 : i32, message = "nh,mh->nm"}> : () -> ()
    %cst_26 = arith.constant dense<0.000000e+00> : vector<128x32xf32>
    %53 = tpu.matmul %51, %52, %cst_26 {dimension_numbers = #tpu.dot_dimension_numbers<[1], [1], [0], [0], [0, 0, 1, 0], [], []>} : vector<128x128xbf16>, vector<32x128xbf16>, vector<128x32xf32> -> vector<128x32xf32>
    "tpu.trace_stop"() : () -> ()
    %cst_27 = arith.constant 0.353553385 : f32
    %54 = vector.broadcast %cst_27 : f32 to vector<128x32xf32>
    %55 = arith.mulf %53, %54 : vector<128x32xf32>
    %c0_28 = arith.constant 0 : index
    %c0_29 = arith.constant 0 : index
    %56 = vector.load %arg1[%c0_28, %c0_29] : memref<128x32xf32, #tpu.memory_space<vmem>>, vector<128x32xf32>
    %57 = arith.addf %55, %56 : vector<128x32xf32>
    %cst_30 = arith.constant dense<0xFF800000> : vector<128xf32>
    %58 = vector.multi_reduction <maximumf>, %57, %cst_30 [1] : vector<128x32xf32> to vector<128xf32>
    %59 = vector.shape_cast %58 : vector<128xf32> to vector<128x1xf32>
    %60 = vector.broadcast %59 : vector<128x1xf32> to vector<128x32xf32>
    %61 = arith.subf %57, %60 : vector<128x32xf32>
    %62 = math.exp %61 : vector<128x32xf32>
    %cst_31 = arith.constant dense<0.000000e+00> : vector<128xf32>
    %63 = vector.multi_reduction <add>, %62, %cst_31 [1] : vector<128x32xf32> to vector<128xf32>
    %64 = vector.shape_cast %63 : vector<128xf32> to vector<128x1xf32>
    %65 = tpu.reciprocal %64 {approx = true} : vector<128x1xf32> -> vector<128x1xf32>
    %66 = vector.broadcast %65 : vector<128x1xf32> to vector<128x32xf32>
    %67 = arith.mulf %62, %66 : vector<128x32xf32>
    %68 = arith.truncf %67 : vector<128x32xf32> to vector<128x32xbf16>
    %69 = arith.truncf %47 : vector<32x128xf32> to vector<32x128xbf16>
    %cst_32 = arith.constant dense<0.000000e+00> : vector<128x128xf32>
    %70 = tpu.matmul %68, %69, %cst_32 {dimension_numbers = #tpu.dot_dimension_numbers<[1], [0], [0], [1], [0, 0, 1, 1], [], []>} : vector<128x32xbf16>, vector<32x128xbf16>, vector<128x128xf32> -> vector<128x128xf32>
    %71 = arith.mulf %70, %48 : vector<128x128xf32>
    %72 = vector.extract_strided_slice %71 {offsets = [0, 0], sizes = [32, 128], strides = [1, 1]} : vector<128x128xf32> to vector<32x128xf32>
    %73 = vector.extract_strided_slice %71 {offsets = [32, 0], sizes = [32, 128], strides = [1, 1]} : vector<128x128xf32> to vector<32x128xf32>
    %74 = arith.addf %72, %73 : vector<32x128xf32>
    %75 = vector.extract_strided_slice %71 {offsets = [64, 0], sizes = [32, 128], strides = [1, 1]} : vector<128x128xf32> to vector<32x128xf32>
    %76 = arith.addf %74, %75 : vector<32x128xf32>
    %77 = vector.extract_strided_slice %71 {offsets = [96, 0], sizes = [32, 128], strides = [1, 1]} : vector<128x128xf32> to vector<32x128xf32>
    %78 = arith.addf %76, %77 : vector<32x128xf32>
    %79 = arith.truncf %78 : vector<32x128xf32> to vector<32x128xbf16>
    %c0_33 = arith.constant 0 : index
    %c0_34 = arith.constant 0 : index
    %80 = vector.load %arg12[%c0_33, %c0_34] : memref<128x128xbf16, #tpu.memory_space<vmem>>, vector<128x128xbf16>
    %cst_35 = arith.constant dense<0.000000e+00> : vector<32x128xf32>
    %81 = tpu.matmul %79, %80, %cst_35 {dimension_numbers = #tpu.dot_dimension_numbers<[1], [0], [0], [1], [0, 0, 1, 1], [], []>} : vector<32x128xbf16>, vector<128x128xbf16>, vector<32x128xf32> -> vector<32x128xf32>
    %c0_36 = arith.constant 0 : index
    %c0_37 = arith.constant 0 : index
    %82 = vector.load %arg13[%c0_36, %c0_37] : memref<1x128xf32, #tpu.memory_space<vmem>>, vector<1x128xf32>
    %83 = vector.broadcast %82 : vector<1x128xf32> to vector<32x128xf32>
    %84 = arith.addf %81, %83 : vector<32x128xf32>
    %85 = arith.addf %29, %84 : vector<32x128xf32>
    %c0_38 = arith.constant 0 : index
    %c0_39 = arith.constant 0 : index
    %86 = vector.load %arg14[%c0_38, %c0_39] : memref<1x128xf32, #tpu.memory_space<vmem>>, vector<1x128xf32>
    %c0_40 = arith.constant 0 : index
    %c0_41 = arith.constant 0 : index
    %87 = vector.load %arg15[%c0_40, %c0_41] : memref<1x128xf32, #tpu.memory_space<vmem>>, vector<1x128xf32>
    %cst_42 = arith.constant dense<0.000000e+00> : vector<32xf32>
    %88 = vector.multi_reduction <add>, %85, %cst_42 [1] : vector<32x128xf32> to vector<32xf32>
    %89 = vector.shape_cast %88 : vector<32xf32> to vector<32x1xf32>
    %cst_43 = arith.constant 3.125000e-02 : f32
    %90 = vector.broadcast %cst_43 : f32 to vector<32x1xf32>
    %91 = arith.mulf %89, %90 : vector<32x1xf32>
    %92 = vector.broadcast %91 : vector<32x1xf32> to vector<32x128xf32>
    %93 = arith.subf %85, %92 : vector<32x128xf32>
    %94 = vector.broadcast %4 : vector<1x128xf32> to vector<32x128xf32>
    %95 = arith.mulf %93, %94 : vector<32x128xf32>
    %96 = arith.mulf %95, %95 : vector<32x128xf32>
    %cst_44 = arith.constant dense<0.000000e+00> : vector<32xf32>
    %97 = vector.multi_reduction <add>, %96, %cst_44 [1] : vector<32x128xf32> to vector<32xf32>
    %98 = vector.shape_cast %97 : vector<32xf32> to vector<32x1xf32>
    %cst_45 = arith.constant 3.125000e-02 : f32
    %99 = vector.broadcast %cst_45 : f32 to vector<32x1xf32>
    %100 = arith.mulf %98, %99 : vector<32x1xf32>
    %cst_46 = arith.constant 9.99999996E-13 : f32
    %101 = vector.broadcast %cst_46 : f32 to vector<32x1xf32>
    %102 = arith.addf %100, %101 : vector<32x1xf32>
    %103 = math.rsqrt %102 : vector<32x1xf32>
    %104 = vector.broadcast %103 : vector<32x1xf32> to vector<32x128xf32>
    %105 = arith.mulf %95, %104 : vector<32x128xf32>
    %106 = vector.broadcast %86 : vector<1x128xf32> to vector<32x128xf32>
    %107 = arith.mulf %105, %106 : vector<32x128xf32>
    %108 = vector.broadcast %87 : vector<1x128xf32> to vector<32x128xf32>
    %109 = arith.addf %107, %108 : vector<32x128xf32>
    %110 = arith.truncf %109 : vector<32x128xf32> to vector<32x128xbf16>
    %c0_47 = arith.constant 0 : index
    %c0_48 = arith.constant 0 : index
    %111 = vector.load %arg16[%c0_47, %c0_48] : memref<128x128xbf16, #tpu.memory_space<vmem>>, vector<128x128xbf16>
    %cst_49 = arith.constant dense<0.000000e+00> : vector<32x128xf32>
    %112 = tpu.matmul %110, %111, %cst_49 {dimension_numbers = #tpu.dot_dimension_numbers<[1], [0], [0], [1], [0, 0, 1, 1], [], []>} : vector<32x128xbf16>, vector<128x128xbf16>, vector<32x128xf32> -> vector<32x128xf32>
    %c0_50 = arith.constant 0 : index
    %c0_51 = arith.constant 0 : index
    %113 = vector.load %arg17[%c0_50, %c0_51] : memref<1x128xf32, #tpu.memory_space<vmem>>, vector<1x128xf32>
    %114 = vector.broadcast %113 : vector<1x128xf32> to vector<32x128xf32>
    %115 = arith.addf %112, %114 : vector<32x128xf32>
    %116 = arith.mulf %115, %115 : vector<32x128xf32>
    %117 = arith.mulf %115, %116 : vector<32x128xf32>
    %cst_52 = arith.constant 4.471500e-02 : f32
    %118 = vector.broadcast %cst_52 : f32 to vector<32x128xf32>
    %119 = arith.mulf %118, %117 : vector<32x128xf32>
    %120 = arith.addf %115, %119 : vector<32x128xf32>
    %cst_53 = arith.constant 0.797884583 : f32
    %121 = vector.broadcast %cst_53 : f32 to vector<32x128xf32>
    %122 = arith.mulf %121, %120 : vector<32x128xf32>
    %123 = math.tanh %122 : vector<32x128xf32>
    %cst_54 = arith.constant 1.000000e+00 : f32
    %124 = vector.broadcast %cst_54 : f32 to vector<32x128xf32>
    %125 = arith.addf %124, %123 : vector<32x128xf32>
    %cst_55 = arith.constant 5.000000e-01 : f32
    %126 = vector.broadcast %cst_55 : f32 to vector<32x128xf32>
    %127 = arith.mulf %126, %125 : vector<32x128xf32>
    %128 = arith.mulf %115, %127 : vector<32x128xf32>
    %129 = arith.truncf %128 : vector<32x128xf32> to vector<32x128xbf16>
    %c0_56 = arith.constant 0 : index
    %c0_57 = arith.constant 0 : index
    %130 = vector.load %arg18[%c0_56, %c0_57] : memref<128x128xbf16, #tpu.memory_space<vmem>>, vector<128x128xbf16>
    %cst_58 = arith.constant dense<0.000000e+00> : vector<32x128xf32>
    %131 = tpu.matmul %129, %130, %cst_58 {dimension_numbers = #tpu.dot_dimension_numbers<[1], [0], [0], [1], [0, 0, 1, 1], [], []>} : vector<32x128xbf16>, vector<128x128xbf16>, vector<32x128xf32> -> vector<32x128xf32>
    %c0_59 = arith.constant 0 : index
    %c0_60 = arith.constant 0 : index
    %132 = vector.load %arg19[%c0_59, %c0_60] : memref<1x128xf32, #tpu.memory_space<vmem>>, vector<1x128xf32>
    %133 = vector.broadcast %132 : vector<1x128xf32> to vector<32x128xf32>
    %134 = arith.addf %131, %133 : vector<32x128xf32>
    %135 = arith.addf %109, %134 : vector<32x128xf32>
    %c0_61 = arith.constant 0 : index
    %c0_62 = arith.constant 0 : index
    %136 = vector.load %arg20[%c0_61, %c0_62] : memref<1x128xf32, #tpu.memory_space<vmem>>, vector<1x128xf32>
    %c0_63 = arith.constant 0 : index
    %c0_64 = arith.constant 0 : index
    %137 = vector.load %arg21[%c0_63, %c0_64] : memref<1x128xf32, #tpu.memory_space<vmem>>, vector<1x128xf32>
    %cst_65 = arith.constant dense<0.000000e+00> : vector<32xf32>
    %138 = vector.multi_reduction <add>, %135, %cst_65 [1] : vector<32x128xf32> to vector<32xf32>
    %139 = vector.shape_cast %138 : vector<32xf32> to vector<32x1xf32>
    %cst_66 = arith.constant 3.125000e-02 : f32
    %140 = vector.broadcast %cst_66 : f32 to vector<32x1xf32>
    %141 = arith.mulf %139, %140 : vector<32x1xf32>
    %142 = vector.broadcast %141 : vector<32x1xf32> to vector<32x128xf32>
    %143 = arith.subf %135, %142 : vector<32x128xf32>
    %144 = vector.broadcast %4 : vector<1x128xf32> to vector<32x128xf32>
    %145 = arith.mulf %143, %144 : vector<32x128xf32>
    %146 = arith.mulf %145, %145 : vector<32x128xf32>
    %cst_67 = arith.constant dense<0.000000e+00> : vector<32xf32>
    %147 = vector.multi_reduction <add>, %146, %cst_67 [1] : vector<32x128xf32> to vector<32xf32>
    %148 = vector.shape_cast %147 : vector<32xf32> to vector<32x1xf32>
    %cst_68 = arith.constant 3.125000e-02 : f32
    %149 = vector.broadcast %cst_68 : f32 to vector<32x1xf32>
    %150 = arith.mulf %148, %149 : vector<32x1xf32>
    %cst_69 = arith.constant 9.99999996E-13 : f32
    %151 = vector.broadcast %cst_69 : f32 to vector<32x1xf32>
    %152 = arith.addf %150, %151 : vector<32x1xf32>
    %153 = math.rsqrt %152 : vector<32x1xf32>
    %154 = vector.broadcast %153 : vector<32x1xf32> to vector<32x128xf32>
    %155 = arith.mulf %145, %154 : vector<32x128xf32>
    %156 = vector.broadcast %136 : vector<1x128xf32> to vector<32x128xf32>
    %157 = arith.mulf %155, %156 : vector<32x128xf32>
    %158 = vector.broadcast %137 : vector<1x128xf32> to vector<32x128xf32>
    %159 = arith.addf %157, %158 : vector<32x128xf32>
    %160 = arith.truncf %159 : vector<32x128xf32> to vector<32x128xbf16>
    %c0_70 = arith.constant 0 : index
    %c0_71 = arith.constant 0 : index
    %161 = vector.load %arg22[%c0_70, %c0_71] : memref<128x128xbf16, #tpu.memory_space<vmem>>, vector<128x128xbf16>
    %cst_72 = arith.constant dense<0.000000e+00> : vector<32x128xf32>
    %162 = tpu.matmul %160, %161, %cst_72 {dimension_numbers = #tpu.dot_dimension_numbers<[1], [0], [0], [1], [0, 0, 1, 1], [], []>} : vector<32x128xbf16>, vector<128x128xbf16>, vector<32x128xf32> -> vector<32x128xf32>
    %c0_73 = arith.constant 0 : index
    %c0_74 = arith.constant 0 : index
    %163 = vector.load %arg23[%c0_73, %c0_74] : memref<1x128xf32, #tpu.memory_space<vmem>>, vector<1x128xf32>
    %164 = vector.broadcast %163 : vector<1x128xf32> to vector<32x128xf32>
    %165 = arith.addf %162, %164 : vector<32x128xf32>
    %c0_75 = arith.constant 0 : index
    %c0_76 = arith.constant 0 : index
    %166 = vector.load %arg2[%c0_75, %c0_76] : memref<32x1xf32, #tpu.memory_space<vmem>>, vector<32x1xf32>
    %cst_77 = arith.constant 5.000000e-01 : f32
    %167 = vector.broadcast %cst_77 : f32 to vector<32x1xf32>
    %168 = arith.cmpf ogt, %166, %167 : vector<32x1xf32>
    %cst_78 = arith.constant -1.000000e+09 : f32
    %169 = vector.shape_cast %168 : vector<32x1xi1> to vector<32x1xi1>
    %170 = vector.broadcast %169 : vector<32x1xi1> to vector<32x128xi1>
    %171 = vector.broadcast %cst_78 : f32 to vector<32x128xf32>
    %172 = arith.select %170, %165, %171 : vector<32x128xi1>, vector<32x128xf32>
    %c0_79 = arith.constant 0 : index
    %c0_80 = arith.constant 0 : index
    %173 = vector.load %arg24[%c0_79, %c0_80] : memref<32x128xf32, #tpu.memory_space<vmem>>, vector<32x128xf32>
    tpu.vector_store %arg24[%c0_79, %c0_80], %172 {strides = array<i32>} : memref<32x128xf32, #tpu.memory_space<vmem>>, vector<32x128xf32>,
    return
  }
}

</mosaic_0001>

<llo_original>
// kernel: tpu_custom_call.1
$region0: #{tpu_custom_call.1}
  #allocation0 [shape = 'u32[]', space=smem, size = 0x4, offset = 0x4, fixed_abs, tag = 'smem constant byte address 0x4 - core index']
  #allocation1 [shape = 'u32[144,128]{1,0:T(1,128)}', space=vmem, size = 0x12000, scoped, tag = 'internal scratch']
  %s0 = inlined_call_operand.hbm [shape: f32[32,128], index: 0, kind: input, shape index: {}]
  %s1 = inlined_call_operand.vmem [shape: f32[128,32], index: 1, kind: input, shape index: {}]
  %s2 = inlined_call_operand.vmem [shape: f32[32,1], index: 2, kind: input, shape index: {}]
  %s3 = inlined_call_operand.vmem [shape: f32[128,128], index: 3, kind: input, shape index: {}]
  %s4 = inlined_call_operand.vmem [shape: f32[1,128], index: 4, kind: input, shape index: {}]
  %s5 = inlined_call_operand.vmem [shape: f32[1,128], index: 5, kind: input, shape index: {}]
  %s6 = inlined_call_operand.vmem [shape: bf16[128,128], index: 6, kind: input, shape index: {}]
  %s7 = inlined_call_operand.vmem [shape: f32[1,128], index: 7, kind: input, shape index: {}]
  %s8 = inlined_call_operand.hbm [shape: bf16[128,128], index: 8, kind: input, shape index: {}]
  %s9 = inlined_call_operand.vmem [shape: f32[1,128], index: 9, kind: input, shape index: {}]
  %s10 = inlined_call_operand.hbm [shape: bf16[128,128], index: 10, kind: input, shape index: {}]
  %s11 = inlined_call_operand.vmem [shape: f32[1,128], index: 11, kind: input, shape index: {}]
  %s12 = inlined_call_operand.hbm [shape: bf16[128,128], index: 12, kind: input, shape index: {}]
  %s13 = inlined_call_operand.vmem [shape: f32[1,128], index: 13, kind: input, shape index: {}]
  %s14 = inlined_call_operand.vmem [shape: f32[1,128], index: 14, kind: input, shape index: {}]
  %s15 = inlined_call_operand.vmem [shape: f32[1,128], index: 15, kind: input, shape index: {}]
  %s16 = inlined_call_operand.hbm [shape: bf16[128,128], index: 16, kind: input, shape index: {}]
  %s17 = inlined_call_operand.vmem [shape: f32[1,128], index: 17, kind: input, shape index: {}]
  %s18 = inlined_call_operand.hbm [shape: bf16[128,128], index: 18, kind: input, shape index: {}]
  %s19 = inlined_call_operand.vmem [shape: f32[1,128], index: 19, kind: input, shape index: {}]
  %s20 = inlined_call_operand.vmem [shape: f32[1,128], index: 20, kind: input, shape index: {}]
  %s21 = inlined_call_operand.vmem [shape: f32[1,128], index: 21, kind: input, shape index: {}]
  %s22 = inlined_call_operand.hbm [shape: bf16[128,128], index: 22, kind: input, shape index: {}]
  %s23 = inlined_call_operand.vmem [shape: f32[1,128], index: 23, kind: input, shape index: {}]
  %s24 = inlined_call_operand.hbm [shape: f32[32,128], index: 24, kind: output, shape index: {}]
  %s25 = sld [smem:[#allocation0]]
  $region134: #{tpu_custom_call.1} parent=0
    _
  %s27 = ssub.s32 1, %s25
  %s28 = scalar_select 0, %s27, %s25
  $region1: #{tpu_custom_call.1} parent=0
    #allocation2 [shape = 'u8[16384]{0}', space=vmem, size = 0x4000, scoped, tag = 'input window, operand 0, single buffered']
    #allocation3 [shape = 's32[1]{0}', space=sflag, size = 0x4, scoped, tag = 'scoped memory for tpu_custom_call.1']
    #allocation4 [shape = 's32[1]{0}', space=sflag, size = 0x4, scoped, tag = 'scoped memory for tpu_custom_call.1']
    #allocation5 [shape = 'u8[32768]{0}', space=vmem, size = 0x8000, scoped, tag = 'input window, operand 8, single buffered']
    #allocation6 [shape = 's32[1]{0}', space=sflag, size = 0x4, scoped, tag = 'scoped memory for tpu_custom_call.1']
    #allocation7 [shape = 'u8[32768]{0}', space=vmem, size = 0x8000, scoped, tag = 'input window, operand 10, single buffered']
    #allocation8 [shape = 'u8[32768]{0}', space=vmem, size = 0x8000, scoped, tag = 'input window, operand 12, single buffered']
    #allocation9 [shape = 's32[1]{0}', space=sflag, size = 0x4, scoped, tag = 'scoped memory for tpu_custom_call.1']
    #allocation10 [shape = 'u8[32768]{0}', space=vmem, size = 0x8000, scoped, tag = 'input window, operand 16, single buffered']
    #allocation11 [shape = 'u8[32768]{0}', space=vmem, size = 0x8000, scoped, tag = 'input window, operand 18, single buffered']
    #allocation12 [shape = 's32[1]{0}', space=sflag, size = 0x4, scoped, tag = 'scoped memory for tpu_custom_call.1']
    #allocation13 [shape = 'u8[32768]{0}', space=vmem, size = 0x8000, scoped, tag = 'input window, operand 22, single buffered']
    #allocation14 [shape = 'u8[16384]{0}', space=vmem, size = 0x4000, scoped, tag = 'output window, operand 0, single buffered']
    %29 = vsyncpa [#allocation3], 0
    %30 = vsyncpa [#allocation6], 0
    %31 = vsyncpa [#allocation9], 0
    %32 = vsyncpa [#allocation12], 0
    %33 = vsyncpa [#allocation4], 0
    // Predicated region
    $region2: #{tpu_custom_call.1} parent=1 // pred_check
      _
    $region3: #{tpu_custom_call.1} parent=1 // pred_check_branch
      %35 = sbr.rel (0) target = $region5
    $region4: #{tpu_custom_call.1} parent=1 // pred_region
      %s37 = ssub.s32 512, 512
      %38 = vsyncadd [#allocation3], %s37
      %s39 = sshll.u32 [#allocation2], 4
      %s40 = int_to_ptr.vmem [resolvable:$true] %s39
      %45 = dma.hbm_to_vmem [thread:$0]  %s0, 512, %s40, [#allocation3], 128, 128, 8
    $region5: #{tpu_custom_call.1} parent=1 // pred_fallthru
      _
    // Predicated region
    $region6: #{tpu_custom_call.1} parent=1 // pred_check
      _
    $region7: #{tpu_custom_call.1} parent=1 // pred_check_branch
      %47 = sbr.rel (0) target = $region9
    $region8: #{tpu_custom_call.1} parent=1 // pred_region
      _
    $region9: #{tpu_custom_call.1} parent=1 // pred_fallthru
      _
    // Predicated region
    $region10: #{tpu_custom_call.1} parent=1 // pred_check
      _
    $region11: #{tpu_custom_call.1} parent=1 // pred_check_branch
      %49 = sbr.rel (0) target = $region13
    $region12: #{tpu_custom_call.1} parent=1 // pred_region
      _
    $region13: #{tpu_custom_call.1} parent=1 // pred_fallthru
      _
    // Predicated region
    $region14: #{tpu_custom_call.1} parent=1 // pred_check
      _
    $region15: #{tpu_custom_call.1} parent=1 // pred_check_branch
      %51 = sbr.rel (0) target = $region17
    $region16: #{tpu_custom_call.1} parent=1 // pred_region
      _
    $region17: #{tpu_custom_call.1} parent=1 // pred_fallthru
      _
    // Predicated region
    $region18: #{tpu_custom_call.1} parent=1 // pred_check
      _
    $region19: #{tpu_custom_call.1} parent=1 // pred_check_branch
      %53 = sbr.rel (0) target = $region21
    $region20: #{tpu_custom_call.1} parent=1 // pred_region
      _
    $region21: #{tpu_custom_call.1} parent=1 // pred_fallthru
      _
    // Predicated region
    $region22: #{tpu_custom_call.1} parent=1 // pred_check
      _
    $region23: #{tpu_custom_call.1} parent=1 // pred_check_branch
      %55 = sbr.rel (0) target = $region25
    $region24: #{tpu_custom_call.1} parent=1 // pred_region
      _
    $region25: #{tpu_custom_call.1} parent=1 // pred_fallthru
      _
    // Predicated region
    $region26: #{tpu_custom_call.1} parent=1 // pred_check
      _
    $region27: #{tpu_custom_call.1} parent=1 // pred_check_branch
      %57 = sbr.rel (0) target = $region29
    $region28: #{tpu_custom_call.1} parent=1 // pred_region
      _
    $region29: #{tpu_custom_call.1} parent=1 // pred_fallthru
      _
    // Predicated region
    $region30: #{tpu_custom_call.1} parent=1 // pred_check
      _
    $region31: #{tpu_custom_call.1} parent=1 // pred_check_branch
      %59 = sbr.rel (0) target = $region33
    $region32: #{tpu_custom_call.1} parent=1 // pred_region
      _
    $region33: #{tpu_custom_call.1} parent=1 // pred_fallthru
      _
    // Predicated region
    $region34: #{tpu_custom_call.1} parent=1 // pred_check
      _
    $region35: #{tpu_custom_call.1} parent=1 // pred_check_branch
      %61 = sbr.rel (0) target = $region37
    $region36: #{tpu_custom_call.1} parent=1 // pred_region
      %s63 = ssub.s32 1024, 1024
      %64 = vsyncadd [#allocation6], %s63
      %s65 = sshll.u32 [#allocation5], 4
      %s66 = int_to_ptr.vmem [resolvable:$true] %s65
      %71 = dma.hbm_to_vmem [thread:$0]  %s8, 1024, %s66, [#allocation6], 64, 64, 4
    $region37: #{tpu_custom_call.1} parent=1 // pred_fallthru
      _
    // Predicated region
    $region38: #{tpu_custom_call.1} parent=1 // pred_check
      _
    $region39: #{tpu_custom_call.1} parent=1 // pred_check_branch
      %73 = sbr.rel (0) target = $region41
    $region40: #{tpu_custom_call.1} parent=1 // pred_region
      _
    $region41: #{tpu_custom_call.1} parent=1 // pred_fallthru
      _
    // Predicated region
    $region42: #{tpu_custom_call.1} parent=1 // pred_check
      _
    $region43: #{tpu_custom_call.1} parent=1 // pred_check_branch
      %75 = sbr.rel (0) target = $region45
    $region44: #{tpu_custom_call.1} parent=1 // pred_region
      %s77 = ssub.s32 1024, 1024
      %78 = vsyncadd [#allocation6], %s77
      %s79 = sshll.u32 [#allocation7], 4
      %s80 = int_to_ptr.vmem [resolvable:$true] %s79
      %85 = dma.hbm_to_vmem [thread:$0]  %s10, 1024, %s80, [#allocation6], 64, 64, 4
    $region45: #{tpu_custom_call.1} parent=1 // pred_fallthru
      _
    // Predicated region
    $region46: #{tpu_custom_call.1} parent=1 // pred_check
      _
    $region47: #{tpu_custom_call.1} parent=1 // pred_check_branch
      %87 = sbr.rel (0) target = $region49
    $region48: #{tpu_custom_call.1} parent=1 // pred_region
      _
    $region49: #{tpu_custom_call.1} parent=1 // pred_fallthru
      _
    // Predicated region
    $region50: #{tpu_custom_call.1} parent=1 // pred_check
      _
    $region51: #{tpu_custom_call.1} parent=1 // pred_check_branch
      %89 = sbr.rel (0) target = $region53
    $region52: #{tpu_custom_call.1} parent=1 // pred_region
      %s91 = ssub.s32 1024, 1024
      %92 = vsyncadd [#allocation9], %s91
      %s93 = sshll.u32 [#allocation8], 4
      %s94 = int_to_ptr.vmem [resolvable:$true] %s93
      %99 = dma.hbm_to_vmem [thread:$0]  %s12, 1024, %s94, [#allocation9], 64, 64, 4
    $region53: #{tpu_custom_call.1} parent=1 // pred_fallthru
      _
    // Predicated region
    $region54: #{tpu_custom_call.1} parent=1 // pred_check
      _
    $region55: #{tpu_custom_call.1} parent=1 // pred_check_branch
      %101 = sbr.rel (0) target = $region57
    $region56: #{tpu_custom_call.1} parent=1 // pred_region
      _
    $region57: #{tpu_custom_call.1} parent=1 // pred_fallthru
      _
    // Predicated region
    $region58: #{tpu_custom_call.1} parent=1 // pred_check
      _
    $region59: #{tpu_custom_call.1} parent=1 // pred_check_branch
      %103 = sbr.rel (0) target = $region61
    $region60: #{tpu_custom_call.1} parent=1 // pred_region
      _
    $region61: #{tpu_custom_call.1} parent=1 // pred_fallthru
      _
    // Predicated region
    $region62: #{tpu_custom_call.1} parent=1 // pred_check
      _
    $region63: #{tpu_custom_call.1} parent=1 // pred_check_branch
      %105 = sbr.rel (0) target = $region65
    $region64: #{tpu_custom_call.1} parent=1 // pred_region
      _
    $region65: #{tpu_custom_call.1} parent=1 // pred_fallthru
      _
    // Predicated region
    $region66: #{tpu_custom_call.1} parent=1 // pred_check
      _
    $region67: #{tpu_custom_call.1} parent=1 // pred_check_branch
      %107 = sbr.rel (0) target = $region69
    $region68: #{tpu_custom_call.1} parent=1 // pred_region
      %s109 = ssub.s32 1024, 1024
      %110 = vsyncadd [#allocation9], %s109
      %s111 = sshll.u32 [#allocation10], 4
      %s112 = int_to_ptr.vmem [resolvable:$true] %s111
      %117 = dma.hbm_to_vmem [thread:$0]  %s16, 1024, %s112, [#allocation9], 64, 64, 4
    $region69: #{tpu_custom_call.1} parent=1 // pred_fallthru
      _
    // Predicated region
    $region70: #{tpu_custom_call.1} parent=1 // pred_check
      _
    $region71: #{tpu_custom_call.1} parent=1 // pred_check_branch
      %119 = sbr.rel (0) target = $region73
    $region72: #{tpu_custom_call.1} parent=1 // pred_region
      _
    $region73: #{tpu_custom_call.1} parent=1 // pred_fallthru
      _
    // Predicated region
    $region74: #{tpu_custom_call.1} parent=1 // pred_check
      _
    $region75: #{tpu_custom_call.1} parent=1 // pred_check_branch
      %121 = sbr.rel (0) target = $region77
    $region76: #{tpu_custom_call.1} parent=1 // pred_region
      %s123 = ssub.s32 1024, 1024
      %124 = vsyncadd [#allocation12], %s123
      %s125 = sshll.u32 [#allocation11], 4
      %s126 = int_to_ptr.vmem [resolvable:$true] %s125
      %131 = dma.hbm_to_vmem [thread:$0]  %s18, 1024, %s126, [#allocation12], 64, 64, 4
    $region77: #{tpu_custom_call.1} parent=1 // pred_fallthru
      _
    // Predicated region
    $region78: #{tpu_custom_call.1} parent=1 // pred_check
      _
    $region79: #{tpu_custom_call.1} parent=1 // pred_check_branch
      %133 = sbr.rel (0) target = $region81
    $region80: #{tpu_custom_call.1} parent=1 // pred_region
      _
    $region81: #{tpu_custom_call.1} parent=1 // pred_fallthru
      _
    // Predicated region
    $region82: #{tpu_custom_call.1} parent=1 // pred_check
      _
    $region83: #{tpu_custom_call.1} parent=1 // pred_check_branch
      %135 = sbr.rel (0) target = $region85
    $region84: #{tpu_custom_call.1} parent=1 // pred_region
      _
    $region85: #{tpu_custom_call.1} parent=1 // pred_fallthru
      _
    // Predicated region
    $region86: #{tpu_custom_call.1} parent=1 // pred_check
      _
    $region87: #{tpu_custom_call.1} parent=1 // pred_check_branch
      %137 = sbr.rel (0) target = $region89
    $region88: #{tpu_custom_call.1} parent=1 // pred_region
      _
    $region89: #{tpu_custom_call.1} parent=1 // pred_fallthru
      _
    // Predicated region
    $region90: #{tpu_custom_call.1} parent=1 // pred_check
      _
    $region91: #{tpu_custom_call.1} parent=1 // pred_check_branch
      %139 = sbr.rel (0) target = $region93
    $region92: #{tpu_custom_call.1} parent=1 // pred_region
      %s141 = ssub.s32 1024, 1024
      %142 = vsyncadd [#allocation12], %s141
      %s143 = sshll.u32 [#allocation13], 4
      %s144 = int_to_ptr.vmem [resolvable:$true] %s143
      %149 = dma.hbm_to_vmem [thread:$0]  %s22, 1024, %s144, [#allocation12], 64, 64, 4
    $region93: #{tpu_custom_call.1} parent=1 // pred_fallthru
      _
    // Predicated region
    $region94: #{tpu_custom_call.1} parent=1 // pred_check
      _
    $region95: #{tpu_custom_call.1} parent=1 // pred_check_branch
      %151 = sbr.rel (0) target = $region97
    $region96: #{tpu_custom_call.1} parent=1 // pred_region
      _
    $region97: #{tpu_custom_call.1} parent=1 // pred_fallthru
      _
    // Predicated region
    $region98: #{tpu_custom_call.1} parent=1 // pred_check
      _
    $region99: #{tpu_custom_call.1} parent=1 // pred_check_branch
      %153 = sbr.rel (0) target = $region101
    $region100: #{tpu_custom_call.1} parent=1 // pred_region
      %154 = dma.done [#allocation3], 512
    $region101: #{tpu_custom_call.1} parent=1 // pred_fallthru
      _
    // Predicated region
    $region102: #{tpu_custom_call.1} parent=1 // pred_check
      _
    $region103: #{tpu_custom_call.1} parent=1 // pred_check_branch
      %156 = sbr.rel (0) target = $region105
    $region104: #{tpu_custom_call.1} parent=1 // pred_region
      %157 = dma.done [#allocation6], 1024
    $region105: #{tpu_custom_call.1} parent=1 // pred_fallthru
      _
    // Predicated region
    $region106: #{tpu_custom_call.1} parent=1 // pred_check
      _
    $region107: #{tpu_custom_call.1} parent=1 // pred_check_branch
      %159 = sbr.rel (0) target = $region109
    $region108: #{tpu_custom_call.1} parent=1 // pred_region
      %160 = dma.done [#allocation6], 1024
    $region109: #{tpu_custom_call.1} parent=1 // pred_fallthru
      _
    // Predicated region
    $region110: #{tpu_custom_call.1} parent=1 // pred_check
      _
    $region111: #{tpu_custom_call.1} parent=1 // pred_check_branch
      %162 = sbr.rel (0) target = $region113
    $region112: #{tpu_custom_call.1} parent=1 // pred_region
      %163 = dma.done [#allocation9], 1024
    $region113: #{tpu_custom_call.1} parent=1 // pred_fallthru
      _
    // Predicated region
    $region114: #{tpu_custom_call.1} parent=1 // pred_check
      _
    $region115: #{tpu_custom_call.1} parent=1 // pred_check_branch
      %165 = sbr.rel (0) target = $region117
    $region116: #{tpu_custom_call.1} parent=1 // pred_region
      %166 = dma.done [#allocation9], 1024
    $region117: #{tpu_custom_call.1} parent=1 // pred_fallthru
      _
    // Predicated region
    $region118: #{tpu_custom_call.1} parent=1 // pred_check
      _
    $region119: #{tpu_custom_call.1} parent=1 // pred_check_branch
      %168 = sbr.rel (0) target = $region121
    $region120: #{tpu_custom_call.1} parent=1 // pred_region
      %169 = dma.done [#allocation12], 1024
    $region121: #{tpu_custom_call.1} parent=1 // pred_fallthru
      _
    // Predicated region
    $region122: #{tpu_custom_call.1} parent=1 // pred_check
      _
    $region123: #{tpu_custom_call.1} parent=1 // pred_check_branch
      %171 = sbr.rel (0) target = $region125
    $region124: #{tpu_custom_call.1} parent=1 // pred_region
      %172 = dma.done [#allocation12], 1024
    $region125: #{tpu_custom_call.1} parent=1 // pred_fallthru
      _
    %v174 = vlaneseq
    %v175 = vand.u32 %v174, 127
    %vm176 = vcmp.lt.s32.totalorder %v175, 32
    %v177 = vsel %vm176, 1, 0
    %v178 = vcvt.s32.f32 %v177
    %v179 = vld [vmem:[#allocation2] sm:$0xff]
    %v180 = vld [vmem:[#allocation2 + $0x8] sm:$0xff]
    %v181 = vld [vmem:[#allocation2 + $0x10] sm:$0xff]
    %v182 = vld [vmem:[#allocation2 + $0x18] sm:$0xff]
    %v183 = vld [vmem:[%s4] sm:$0x1]
    %v184 = vld [vmem:[%s5] sm:$0x1]
    %185 = vadd.xlane.f32.xlu0 %v179
    %v186 = vpop.xlane.xlu0 %185
    %187 = vadd.xlane.f32.xlu0 %v180
    %v188 = vpop.xlane.xlu0 %187
    %189 = vadd.xlane.f32.xlu0 %v181
    %v190 = vpop.xlane.xlu0 %189
    %191 = vadd.xlane.f32.xlu0 %v182
    %v192 = vpop.xlane.xlu0 %191
    %v193 = vmul.f32 %v186, 0.03125
    %v194 = vmul.f32 %v188, 0.03125
    %v195 = vmul.f32 %v190, 0.03125
    %v196 = vmul.f32 %v192, 0.03125
    %v197 = vsub.f32 %v179, %v193
    %v198 = vsub.f32 %v180, %v194
    %v199 = vsub.f32 %v181, %v195
    %v200 = vsub.f32 %v182, %v196
    %v201 = vmul.f32 %v197, %v178
    %v202 = vmul.f32 %v198, %v178
    %v203 = vmul.f32 %v199, %v178
    %v204 = vmul.f32 %v200, %v178
    %v205 = vmul.f32 %v201, %v201
    %v206 = vmul.f32 %v202, %v202
    %v207 = vmul.f32 %v203, %v203
    %v208 = vmul.f32 %v204, %v204
    %209 = vadd.xlane.f32.xlu0 %v205
    %v210 = vpop.xlane.xlu0 %209
    %211 = vadd.xlane.f32.xlu0 %v206
    %v212 = vpop.xlane.xlu0 %211
    %213 = vadd.xlane.f32.xlu0 %v207
    %v214 = vpop.xlane.xlu0 %213
    %215 = vadd.xlane.f32.xlu0 %v208
    %v216 = vpop.xlane.xlu0 %215
    %v217 = vmul.f32 %v210, 0.03125
    %v218 = vmul.f32 %v212, 0.03125
    %v219 = vmul.f32 %v214, 0.03125
    %v220 = vmul.f32 %v216, 0.03125
    %v221 = vadd.f32 %v217, 1e-12
    %v222 = vadd.f32 %v218, 1e-12
    %v223 = vadd.f32 %v219, 1e-12
    %v224 = vadd.f32 %v220, 1e-12
    %v225 = vrsqrt.pop %v221
    %v226 = vrsqrt.pop %v222
    %v227 = vrsqrt.pop %v223
    %v228 = vrsqrt.pop %v224
    %v229 = vmul.f32 %v201, %v225
    %v230 = vmul.f32 %v202, %v226
    %v231 = vmul.f32 %v203, %v227
    %v232 = vmul.f32 %v204, %v228
    %v234 = vlaneseq
    %v235 = vshrl.u32 %v234, 7
    %v236 = vsub.s32 0, %v235
    %v237 = vrot.slane %v183, %v236
    %v239 = vmul.f32 %v229, %v237
    %v240 = vmul.f32 %v230, %v237
    %v241 = vmul.f32 %v231, %v237
    %v242 = vmul.f32 %v232, %v237
    %v244 = vlaneseq
    %v245 = vshrl.u32 %v244, 7
    %v246 = vsub.s32 0, %v245
    %v247 = vrot.slane %v184, %v246
    %v249 = vadd.f32 %v239, %v247
    %v250 = vadd.f32 %v240, %v247
    %v251 = vadd.f32 %v241, %v247
    %v252 = vadd.f32 %v242, %v247
    %v253 = vpack.c.bf16 %v250, %v249
    %v254 = vpack.c.bf16 %v252, %v251
    %v255 = vld [vmem:[%s6] sm:$0xf]
    %v256 = vld [vmem:[%s6 + $0x4] sm:$0xf]
    %v257 = vld [vmem:[%s6 + $0x8] sm:$0xf]
    %v258 = vld [vmem:[%s6 + $0xc] sm:$0xf]
    %v259 = vld [vmem:[%s6 + $0x10] sm:$0xf]
    %v260 = vld [vmem:[%s6 + $0x14] sm:$0xf]
    %v261 = vld [vmem:[%s6 + $0x18] sm:$0xf]
    %v262 = vld [vmem:[%s6 + $0x1c] sm:$0xf]
    %v263 = vld [vmem:[%s6 + $0x20] sm:$0xf]
    %v264 = vld [vmem:[%s6 + $0x24] sm:$0xf]
    %v265 = vld [vmem:[%s6 + $0x28] sm:$0xf]
    %v266 = vld [vmem:[%s6 + $0x2c] sm:$0xf]
    %v267 = vld [vmem:[%s6 + $0x30] sm:$0xf]
    %v268 = vld [vmem:[%s6 + $0x34] sm:$0xf]
    %v269 = vld [vmem:[%s6 + $0x38] sm:$0xf]
    %v270 = vld [vmem:[%s6 + $0x3c] sm:$0xf]
    %v271 = vld [vmem:[%s7] sm:$0x1]
    %v273 = vlaneseq
    %v274 = vshrl.u32 %v273, 7
    %v275 = vsub.s32 0, %v274
    %v276 = vrot.slane %v271, %v275
    %v294 = vunpack.c.l.b16 %v255
    %v295 = vunpack.c.l.b16 %v256
    %v296 = vunpack.c.l.b16 %v257
    %v297 = vunpack.c.l.b16 %v258
    %v298 = vunpack.c.l.b16 %v259
    %v299 = vunpack.c.l.b16 %v260
    %v300 = vunpack.c.l.b16 %v261
    %v301 = vunpack.c.l.b16 %v262
    %v302 = vunpack.c.l.b16 %v263
    %v303 = vunpack.c.l.b16 %v264
    %v304 = vunpack.c.l.b16 %v265
    %v305 = vunpack.c.l.b16 %v266
    %v306 = vunpack.c.l.b16 %v267
    %v307 = vunpack.c.l.b16 %v268
    %v308 = vunpack.c.l.b16 %v269
    %v309 = vunpack.c.l.b16 %v270
    %v310 = vpack.c.b16 %v295, %v294
    %v311 = vpack.c.b16 %v297, %v296
    %v312 = vpack.c.b16 %v299, %v298
    %v313 = vpack.c.b16 %v301, %v300
    %v314 = vpack.c.b16 %v303, %v302
    %v315 = vpack.c.b16 %v305, %v304
    %v316 = vpack.c.b16 %v307, %v306
    %v317 = vpack.c.b16 %v309, %v308
    %326 = vmatprep.subr.bf16.mxu0 0
    %327 = vmatpush1.bf16.msra.mxu0 %v317
    %328 = vmatprep.subr.bf16.mxu0 0
    %329 = vmatpush1.bf16.msra.mxu0 %v316
    %330 = vmatprep.subr.bf16.mxu0 0
    %331 = vmatpush1.bf16.msra.mxu0 %v315
    %332 = vmatprep.subr.bf16.mxu0 0
    %333 = vmatpush1.bf16.msra.mxu0 %v314
    %334 = vmatprep.subr.bf16.mxu0 0
    %335 = vmatpush1.bf16.msra.mxu0 %v313
    %336 = vmatprep.subr.bf16.mxu0 0
    %337 = vmatpush1.bf16.msra.mxu0 %v312
    %338 = vmatprep.subr.bf16.mxu0 0
    %339 = vmatpush1.bf16.msra.mxu0 %v311
    %340 = vmatprep.subr.bf16.mxu0 0
    %341 = vmatpush1.bf16.msra.mxu0 %v310
    %342 = vmatprep.subr.bf16.mxu0 0
    %343 = vmatpush2.bf16.msra.mxu0 0
    %344 = vmatprep.subr.bf16.mxu0 0
    %345 = vmatpush2.bf16.msra.mxu0 0
    %346 = vmatprep.subr.bf16.mxu0 0
    %347 = vmatpush2.bf16.msra.mxu0 0
    %348 = vmatprep.subr.bf16.mxu0 0
    %349 = vmatpush2.bf16.msra.mxu0 0
    %350 = vmatprep.subr.bf16.mxu0 0
    %351 = vmatpush2.bf16.msra.mxu0 0
    %352 = vmatprep.subr.bf16.mxu0 0
    %353 = vmatpush2.bf16.msra.mxu0 0
    %354 = vmatprep.subr.bf16.mxu0 0
    %355 = vmatpush2.bf16.msra.mxu0 0
    %356 = vmatprep.subr.bf16.mxu0 0
    %357 = vmatpush2.bf16.msra.mxu0 0
    %358 = vmatprep.mubr.bf16.mxu0 0
    %359 = vmatmul.mubr.bf16.gmra.mxu0 %v253
    %v360 = vpop.f32.mrf.mxu0
    %v361 = vadd.f32 %v276, %v360
    %v362 = vpop.f32.mrf.mxu0
    %v363 = vpop.f32.mrf.mxu0
    %v364 = vadd.f32 %v276, %v363
    %v365 = vpop.f32.mrf.mxu0
    %366 = vmatprep.mubr.bf16.mxu0 0
    %367 = vmatmul.mubr.bf16.gmra.mxu0 %v254
    %v368 = vpop.f32.mrf.mxu0
    %v369 = vadd.f32 %v276, %v368
    %v370 = vpop.f32.mrf.mxu0
    %v371 = vpop.f32.mrf.mxu0
    %v372 = vadd.f32 %v276, %v371
    %v373 = vpop.f32.mrf.mxu0
    %374 = vdwg.mxu0
    %v375 = vld [vmem:[#allocation5] sm:$0xf]
    %v376 = vld [vmem:[#allocation5 + $0x4] sm:$0xf]
    %v377 = vld [vmem:[#allocation5 + $0x8] sm:$0xf]
    %v378 = vld [vmem:[#allocation5 + $0xc] sm:$0xf]
    %v379 = vld [vmem:[#allocation5 + $0x10] sm:$0xf]
    %v380 = vld [vmem:[#allocation5 + $0x14] sm:$0xf]
    %v381 = vld [vmem:[#allocation5 + $0x18] sm:$0xf]
    %v382 = vld [vmem:[#allocation5 + $0x1c] sm:$0xf]
    %v383 = vld [vmem:[#allocation5 + $0x20] sm:$0xf]
    %v384 = vld [vmem:[#allocation5 + $0x24] sm:$0xf]
    %v385 = vld [vmem:[#allocation5 + $0x28] sm:$0xf]
    %v386 = vld [vmem:[#allocation5 + $0x2c] sm:$0xf]
    %v387 = vld [vmem:[#allocation5 + $0x30] sm:$0xf]
    %v388 = vld [vmem:[#allocation5 + $0x34] sm:$0xf]
    %v389 = vld [vmem:[#allocation5 + $0x38] sm:$0xf]
    %v390 = vld [vmem:[#allocation5 + $0x3c] sm:$0xf]
    %v391 = vld [vmem:[%s9] sm:$0x1]
    %v393 = vlaneseq
    %v394 = vshrl.u32 %v393, 7
    %v395 = vsub.s32 0, %v394
    %v396 = vrot.slane %v391, %v395
    %v414 = vunpack.c.l.b16 %v375
    %v415 = vunpack.c.l.b16 %v376
    %v416 = vunpack.c.l.b16 %v377
    %v417 = vunpack.c.l.b16 %v378
    %v418 = vunpack.c.l.b16 %v379
    %v419 = vunpack.c.l.b16 %v380
    %v420 = vunpack.c.l.b16 %v381
    %v421 = vunpack.c.l.b16 %v382
    %v422 = vunpack.c.l.b16 %v383
    %v423 = vunpack.c.l.b16 %v384
    %v424 = vunpack.c.l.b16 %v385
    %v425 = vunpack.c.l.b16 %v386
    %v426 = vunpack.c.l.b16 %v387
    %v427 = vunpack.c.l.b16 %v388
    %v428 = vunpack.c.l.b16 %v389
    %v429 = vunpack.c.l.b16 %v390
    %v430 = vpack.c.b16 %v415, %v414
    %v431 = vpack.c.b16 %v417, %v416
    %v432 = vpack.c.b16 %v419, %v418
    %v433 = vpack.c.b16 %v421, %v420
    %v434 = vpack.c.b16 %v423, %v422
    %v435 = vpack.c.b16 %v425, %v424
    %v436 = vpack.c.b16 %v427, %v426
    %v437 = vpack.c.b16 %v429, %v428
    %446 = vmatprep.subr.bf16.mxu0 0
    %447 = vmatpush1.bf16.msra.mxu0 %v437
    %448 = vmatprep.subr.bf16.mxu0 0
    %449 = vmatpush1.bf16.msra.mxu0 %v436
    %450 = vmatprep.subr.bf16.mxu0 0
    %451 = vmatpush1.bf16.msra.mxu0 %v435
    %452 = vmatprep.subr.bf16.mxu0 0
    %453 = vmatpush1.bf16.msra.mxu0 %v434
    %454 = vmatprep.subr.bf16.mxu0 0
    %455 = vmatpush1.bf16.msra.mxu0 %v433
    %456 = vmatprep.subr.bf16.mxu0 0
    %457 = vmatpush1.bf16.msra.mxu0 %v432
    %458 = vmatprep.subr.bf16.mxu0 0
    %459 = vmatpush1.bf16.msra.mxu0 %v431
    %460 = vmatprep.subr.bf16.mxu0 0
    %461 = vmatpush1.bf16.msra.mxu0 %v430
    %462 = vmatprep.subr.bf16.mxu0 0
    %463 = vmatpush2.bf16.msra.mxu0 0
    %464 = vmatprep.subr.bf16.mxu0 0
    %465 = vmatpush2.bf16.msra.mxu0 0
    %466 = vmatprep.subr.bf16.mxu0 0
    %467 = vmatpush2.bf16.msra.mxu0 0
    %468 = vmatprep.subr.bf16.mxu0 0
    %469 = vmatpush2.bf16.msra.mxu0 0
    %470 = vmatprep.subr.bf16.mxu0 0
    %471 = vmatpush2.bf16.msra.mxu0 0
    %472 = vmatprep.subr.bf16.mxu0 0
    %473 = vmatpush2.bf16.msra.mxu0 0
    %474 = vmatprep.subr.bf16.mxu0 0
    %475 = vmatpush2.bf16.msra.mxu0 0
    %476 = vmatprep.subr.bf16.mxu0 0
    %477 = vmatpush2.bf16.msra.mxu0 0
    %478 = vmatprep.mubr.bf16.mxu0 0
    %479 = vmatmul.mubr.bf16.gmra.mxu0 %v253
    %v480 = vpop.f32.mrf.mxu0
    %v481 = vadd.f32 %v396, %v480
    %v482 = vpop.f32.mrf.mxu0
    %v483 = vpop.f32.mrf.mxu0
    %v484 = vadd.f32 %v396, %v483
    %v485 = vpop.f32.mrf.mxu0
    %486 = vmatprep.mubr.bf16.mxu0 0
    %487 = vmatmul.mubr.bf16.gmra.mxu0 %v254
    %v488 = vpop.f32.mrf.mxu0
    %v489 = vadd.f32 %v396, %v488
    %v490 = vpop.f32.mrf.mxu0
    %v491 = vpop.f32.mrf.mxu0
    %v492 = vadd.f32 %v396, %v491
    %v493 = vpop.f32.mrf.mxu0
    %494 = vdwg.mxu0
    %v495 = vld [vmem:[#allocation7] sm:$0xf]
    %v496 = vld [vmem:[#allocation7 + $0x4] sm:$0xf]
    %v497 = vld [vmem:[#allocation7 + $0x8] sm:$0xf]
    %v498 = vld [vmem:[#allocation7 + $0xc] sm:$0xf]
    %v499 = vld [vmem:[#allocation7 + $0x10] sm:$0xf]
    %v500 = vld [vmem:[#allocation7 + $0x14] sm:$0xf]
    %v501 = vld [vmem:[#allocation7 + $0x18] sm:$0xf]
    %v502 = vld [vmem:[#allocation7 + $0x1c] sm:$0xf]
    %v503 = vld [vmem:[#allocation7 + $0x20] sm:$0xf]
    %v504 = vld [vmem:[#allocation7 + $0x24] sm:$0xf]
    %v505 = vld [vmem:[#allocation7 + $0x28] sm:$0xf]
    %v506 = vld [vmem:[#allocation7 + $0x2c] sm:$0xf]
    %v507 = vld [vmem:[#allocation7 + $0x30] sm:$0xf]
    %v508 = vld [vmem:[#allocation7 + $0x34] sm:$0xf]
    %v509 = vld [vmem:[#allocation7 + $0x38] sm:$0xf]
    %v510 = vld [vmem:[#allocation7 + $0x3c] sm:$0xf]
    %v511 = vld [vmem:[%s11] sm:$0x1]
    %v513 = vlaneseq
    %v514 = vshrl.u32 %v513, 7
    %v515 = vsub.s32 0, %v514
    %v516 = vrot.slane %v511, %v515
    %v534 = vunpack.c.l.b16 %v495
    %v535 = vunpack.c.l.b16 %v496
    %v536 = vunpack.c.l.b16 %v497
    %v537 = vunpack.c.l.b16 %v498
    %v538 = vunpack.c.l.b16 %v499
    %v539 = vunpack.c.l.b16 %v500
    %v540 = vunpack.c.l.b16 %v501
    %v541 = vunpack.c.l.b16 %v502
    %v542 = vunpack.c.l.b16 %v503
    %v543 = vunpack.c.l.b16 %v504
    %v544 = vunpack.c.l.b16 %v505
    %v545 = vunpack.c.l.b16 %v506
    %v546 = vunpack.c.l.b16 %v507
    %v547 = vunpack.c.l.b16 %v508
    %v548 = vunpack.c.l.b16 %v509
    %v549 = vunpack.c.l.b16 %v510
    %v550 = vpack.c.b16 %v535, %v534
    %v551 = vpack.c.b16 %v537, %v536
    %v552 = vpack.c.b16 %v539, %v538
    %v553 = vpack.c.b16 %v541, %v540
    %v554 = vpack.c.b16 %v543, %v542
    %v555 = vpack.c.b16 %v545, %v544
    %v556 = vpack.c.b16 %v547, %v546
    %v557 = vpack.c.b16 %v549, %v548
    %566 = vmatprep.subr.bf16.mxu0 0
    %567 = vmatpush1.bf16.msra.mxu0 %v557
    %568 = vmatprep.subr.bf16.mxu0 0
    %569 = vmatpush1.bf16.msra.mxu0 %v556
    %570 = vmatprep.subr.bf16.mxu0 0
    %571 = vmatpush1.bf16.msra.mxu0 %v555
    %572 = vmatprep.subr.bf16.mxu0 0
    %573 = vmatpush1.bf16.msra.mxu0 %v554
    %574 = vmatprep.subr.bf16.mxu0 0
    %575 = vmatpush1.bf16.msra.mxu0 %v553
    %576 = vmatprep.subr.bf16.mxu0 0
    %577 = vmatpush1.bf16.msra.mxu0 %v552
    %578 = vmatprep.subr.bf16.mxu0 0
    %579 = vmatpush1.bf16.msra.mxu0 %v551
    %580 = vmatprep.subr.bf16.mxu0 0
    %581 = vmatpush1.bf16.msra.mxu0 %v550
    %582 = vmatprep.subr.bf16.mxu0 0
    %583 = vmatpush2.bf16.msra.mxu0 0
    %584 = vmatprep.subr.bf16.mxu0 0
    %585 = vmatpush2.bf16.msra.mxu0 0
    %586 = vmatprep.subr.bf16.mxu0 0
    %587 = vmatpush2.bf16.msra.mxu0 0
    %588 = vmatprep.subr.bf16.mxu0 0
    %589 = vmatpush2.bf16.msra.mxu0 0
    %590 = vmatprep.subr.bf16.mxu0 0
    %591 = vmatpush2.bf16.msra.mxu0 0
    %592 = vmatprep.subr.bf16.mxu0 0
    %593 = vmatpush2.bf16.msra.mxu0 0
    %594 = vmatprep.subr.bf16.mxu0 0
    %595 = vmatpush2.bf16.msra.mxu0 0
    %596 = vmatprep.subr.bf16.mxu0 0
    %597 = vmatpush2.bf16.msra.mxu0 0
    %598 = vmatprep.mubr.bf16.mxu0 0
    %599 = vmatmul.mubr.bf16.gmra.mxu0 %v253
    %v600 = vpop.f32.mrf.mxu0
    %v601 = vadd.f32 %v516, %v600
    %v602 = vpop.f32.mrf.mxu0
    %v603 = vpop.f32.mrf.mxu0
    %v604 = vadd.f32 %v516, %v603
    %v605 = vpop.f32.mrf.mxu0
    %606 = vmatprep.mubr.bf16.mxu0 0
    %607 = vmatmul.mubr.bf16.gmra.mxu0 %v254
    %v608 = vpop.f32.mrf.mxu0
    %v609 = vadd.f32 %v516, %v608
    %v610 = vpop.f32.mrf.mxu0
    %v611 = vpop.f32.mrf.mxu0
    %v612 = vadd.f32 %v516, %v611
    %v613 = vpop.f32.mrf.mxu0
    %614 = vdwg.mxu0
    %v615 = vld [vmem:[%s3] sm:$0xff]
    %v616 = vld [vmem:[%s3 + $0x8] sm:$0xff]
    %v617 = vld [vmem:[%s3 + $0x10] sm:$0xff]
    %v618 = vld [vmem:[%s3 + $0x18] sm:$0xff]
    %v619 = vld [vmem:[%s3 + $0x20] sm:$0xff]
    %v620 = vld [vmem:[%s3 + $0x28] sm:$0xff]
    %v621 = vld [vmem:[%s3 + $0x30] sm:$0xff]
    %v622 = vld [vmem:[%s3 + $0x38] sm:$0xff]
    %v623 = vld [vmem:[%s3 + $0x40] sm:$0xff]
    %v624 = vld [vmem:[%s3 + $0x48] sm:$0xff]
    %v625 = vld [vmem:[%s3 + $0x50] sm:$0xff]
    %v626 = vld [vmem:[%s3 + $0x58] sm:$0xff]
    %v627 = vld [vmem:[%s3 + $0x60] sm:$0xff]
    %v628 = vld [vmem:[%s3 + $0x68] sm:$0xff]
    %v629 = vld [vmem:[%s3 + $0x70] sm:$0xff]
    %v630 = vld [vmem:[%s3 + $0x78] sm:$0xff]
    %v631 = vmul.f32 %v361, %v615
    %v632 = vmul.f32 %v364, %v616
    %v633 = vmul.f32 %v369, %v617
    %v634 = vmul.f32 %v372, %v618
    %v635 = vmul.f32 %v361, %v619
    %v636 = vmul.f32 %v364, %v620
    %v637 = vmul.f32 %v369, %v621
    %v638 = vmul.f32 %v372, %v622
    %v639 = vmul.f32 %v361, %v623
    %v640 = vmul.f32 %v364, %v624
    %v641 = vmul.f32 %v369, %v625
    %v642 = vmul.f32 %v372, %v626
    %v643 = vmul.f32 %v361, %v627
    %v644 = vmul.f32 %v364, %v628
    %v645 = vmul.f32 %v369, %v629
    %v646 = vmul.f32 %v372, %v630
    %v647 = vpack.c.bf16 %v632, %v631
    %v648 = vpack.c.bf16 %v634, %v633
    %v649 = vpack.c.bf16 %v636, %v635
    %v650 = vpack.c.bf16 %v638, %v637
    %v651 = vpack.c.bf16 %v640, %v639
    %v652 = vpack.c.bf16 %v642, %v641
    %v653 = vpack.c.bf16 %v644, %v643
    %v654 = vpack.c.bf16 %v646, %v645
    %v655 = vpack.c.bf16 %v484, %v481
    %v656 = vpack.c.bf16 %v492, %v489
    %657 = vmatprep.subr.bf16.mxu0 0
    %658 = vmatpush1.bf16.xpose.msra.mxu0 0
    %659 = vmatprep.subr.bf16.mxu0 0
    %660 = vmatpush1.bf16.xpose.msra.mxu0 0
    %661 = vmatprep.subr.bf16.mxu0 0
    %662 = vmatpush1.bf16.xpose.msra.mxu0 0
    %663 = vmatprep.subr.bf16.mxu0 0
    %664 = vmatpush1.bf16.xpose.msra.mxu0 0
    %665 = vmatprep.subr.bf16.mxu0 0
    %666 = vmatpush1.bf16.xpose.msra.mxu0 0
    %667 = vmatprep.subr.bf16.mxu0 0
    %668 = vmatpush1.bf16.xpose.msra.mxu0 0
    %669 = vmatprep.subr.bf16.mxu0 0
    %670 = vmatpush1.bf16.xpose.msra.mxu0 %v656
    %671 = vmatprep.subr.bf16.mxu0 0
    %672 = vmatpush1.bf16.xpose.msra.mxu0 %v655
    %673 = vmatprep.subr.bf16.mxu0 0
    %674 = vmatpush2.bf16.xpose.msra.mxu0 0
    %675 = vmatprep.subr.bf16.mxu0 0
    %676 = vmatpush2.bf16.xpose.msra.mxu0 0
    %677 = vmatprep.subr.bf16.mxu0 0
    %678 = vmatpush2.bf16.xpose.msra.mxu0 0
    %679 = vmatprep.subr.bf16.mxu0 0
    %680 = vmatpush2.bf16.xpose.msra.mxu0 0
    %681 = vmatprep.subr.bf16.mxu0 0
    %682 = vmatpush2.bf16.xpose.msra.mxu0 0
    %683 = vmatprep.subr.bf16.mxu0 0
    %684 = vmatpush2.bf16.xpose.msra.mxu0 0
    %685 = vmatprep.subr.bf16.mxu0 0
    %686 = vmatpush2.bf16.xpose.msra.mxu0 0
    %687 = vmatprep.subr.bf16.mxu0 0
    %688 = vmatpush2.bf16.xpose.msra.mxu0 0
    %689 = vmatprep.mubr.bf16.mxu0 0
    %690 = vmatmul.mubr.bf16.gmra.mxu0 %v647
    %v691 = vpop.f32.mrf.mxu0
    %v692 = vadd.f32 0.0, %v691
    %v693 = vpop.f32.mrf.mxu0
    %v694 = vpop.f32.mrf.mxu0
    %v695 = vadd.f32 0.0, %v694
    %v696 = vpop.f32.mrf.mxu0
    %697 = vmatprep.mubr.bf16.mxu0 0
    %698 = vmatmul.mubr.bf16.gmra.mxu0 %v648
    %v699 = vpop.f32.mrf.mxu0
    %v700 = vadd.f32 0.0, %v699
    %v701 = vpop.f32.mrf.mxu0
    %v702 = vpop.f32.mrf.mxu0
    %v703 = vadd.f32 0.0, %v702
    %v704 = vpop.f32.mrf.mxu0
    %705 = vmatprep.mubr.bf16.mxu0 0
    %706 = vmatmul.mubr.bf16.gmra.mxu0 %v649
    %v707 = vpop.f32.mrf.mxu0
    %v708 = vadd.f32 0.0, %v707
    %v709 = vpop.f32.mrf.mxu0
    %v710 = vpop.f32.mrf.mxu0
    %v711 = vadd.f32 0.0, %v710
    %v712 = vpop.f32.mrf.mxu0
    %713 = vmatprep.mubr.bf16.mxu0 0
    %714 = vmatmul.mubr.bf16.gmra.mxu0 %v650
    %v715 = vpop.f32.mrf.mxu0
    %v716 = vadd.f32 0.0, %v715
    %v717 = vpop.f32.mrf.mxu0
    %v718 = vpop.f32.mrf.mxu0
    %v719 = vadd.f32 0.0, %v718
    %v720 = vpop.f32.mrf.mxu0
    %721 = vmatprep.mubr.bf16.mxu0 0
    %722 = vmatmul.mubr.bf16.gmra.mxu0 %v651
    %v723 = vpop.f32.mrf.mxu0
    %v724 = vadd.f32 0.0, %v723
    %v725 = vpop.f32.mrf.mxu0
    %v726 = vpop.f32.mrf.mxu0
    %v727 = vadd.f32 0.0, %v726
    %v728 = vpop.f32.mrf.mxu0
    %729 = vmatprep.mubr.bf16.mxu0 0
    %730 = vmatmul.mubr.bf16.gmra.mxu0 %v652
    %v731 = vpop.f32.mrf.mxu0
    %v732 = vadd.f32 0.0, %v731
    %v733 = vpop.f32.mrf.mxu0
    %v734 = vpop.f32.mrf.mxu0
    %v735 = vadd.f32 0.0, %v734
    %v736 = vpop.f32.mrf.mxu0
    %737 = vmatprep.mubr.bf16.mxu0 0
    %738 = vmatmul.mubr.bf16.gmra.mxu0 %v653
    %v739 = vpop.f32.mrf.mxu0
    %v740 = vadd.f32 0.0, %v739
    %v741 = vpop.f32.mrf.mxu0
    %v742 = vpop.f32.mrf.mxu0
    %v743 = vadd.f32 0.0, %v742
    %v744 = vpop.f32.mrf.mxu0
    %745 = vmatprep.mubr.bf16.mxu0 0
    %746 = vmatmul.mubr.bf16.gmra.mxu0 %v654
    %v747 = vpop.f32.mrf.mxu0
    %v748 = vadd.f32 0.0, %v747
    %v749 = vpop.f32.mrf.mxu0
    %v750 = vpop.f32.mrf.mxu0
    %v751 = vadd.f32 0.0, %v750
    %v752 = vpop.f32.mrf.mxu0
    %753 = vdwg.mxu0
    %v754 = vmul.f32 %v692, 0.35355338
    %v755 = vmul.f32 %v695, 0.35355338
    %v756 = vmul.f32 %v700, 0.35355338
    %v757 = vmul.f32 %v703, 0.35355338
    %v758 = vmul.f32 %v708, 0.35355338
    %v759 = vmul.f32 %v711, 0.35355338
    %v760 = vmul.f32 %v716, 0.35355338
    %v761 = vmul.f32 %v719, 0.35355338
    %v762 = vmul.f32 %v724, 0.35355338
    %v763 = vmul.f32 %v727, 0.35355338
    %v764 = vmul.f32 %v732, 0.35355338
    %v765 = vmul.f32 %v735, 0.35355338
    %v766 = vmul.f32 %v740, 0.35355338
    %v767 = vmul.f32 %v743, 0.35355338
    %v768 = vmul.f32 %v748, 0.35355338
    %v769 = vmul.f32 %v751, 0.35355338
    %v770 = vld [vmem:[%s1] sm:$0xff]
    %v771 = vld [vmem:[%s1 + $0x8] sm:$0xff]
    %v772 = vld [vmem:[%s1 + $0x10] sm:$0xff]
    %v773 = vld [vmem:[%s1 + $0x18] sm:$0xff]
    %v774 = vld [vmem:[%s1 + $0x20] sm:$0xff]
    %v775 = vld [vmem:[%s1 + $0x28] sm:$0xff]
    %v776 = vld [vmem:[%s1 + $0x30] sm:$0xff]
    %v777 = vld [vmem:[%s1 + $0x38] sm:$0xff]
    %v778 = vld [vmem:[%s1 + $0x40] sm:$0xff]
    %v779 = vld [vmem:[%s1 + $0x48] sm:$0xff]
    %v780 = vld [vmem:[%s1 + $0x50] sm:$0xff]
    %v781 = vld [vmem:[%s1 + $0x58] sm:$0xff]
    %v782 = vld [vmem:[%s1 + $0x60] sm:$0xff]
    %v783 = vld [vmem:[%s1 + $0x68] sm:$0xff]
    %v784 = vld [vmem:[%s1 + $0x70] sm:$0xff]
    %v785 = vld [vmem:[%s1 + $0x78] sm:$0xff]
    %v786 = vadd.f32 %v754, %v770
    %v787 = vadd.f32 %v755, %v771
    %v788 = vadd.f32 %v756, %v772
    %v789 = vadd.f32 %v757, %v773
    %v790 = vadd.f32 %v758, %v774
    %v791 = vadd.f32 %v759, %v775
    %v792 = vadd.f32 %v760, %v776
    %v793 = vadd.f32 %v761, %v777
    %v794 = vadd.f32 %v762, %v778
    %v795 = vadd.f32 %v763, %v779
    %v796 = vadd.f32 %v764, %v780
    %v797 = vadd.f32 %v765, %v781
    %v798 = vadd.f32 %v766, %v782
    %v799 = vadd.f32 %v767, %v783
    %v800 = vadd.f32 %v768, %v784
    %v801 = vadd.f32 %v769, %v785
    %vm802 = vcmask 261120
    %v803 = vsel %vm802, %v786, -inf
    %804 = vmax.xlane.f32.xlu0 %v803
    %v805 = vpop.xlane.xlu0 %804
    %v806 = vsel %vm802, %v787, -inf
    %807 = vmax.xlane.f32.xlu0 %v806
    %v808 = vpop.xlane.xlu0 %807
    %v809 = vsel %vm802, %v788, -inf
    %810 = vmax.xlane.f32.xlu0 %v809
    %v811 = vpop.xlane.xlu0 %810
    %v812 = vsel %vm802, %v789, -inf
    %813 = vmax.xlane.f32.xlu0 %v812
    %v814 = vpop.xlane.xlu0 %813
    %v815 = vsel %vm802, %v790, -inf
    %816 = vmax.xlane.f32.xlu0 %v815
    %v817 = vpop.xlane.xlu0 %816
    %v818 = vsel %vm802, %v791, -inf
    %819 = vmax.xlane.f32.xlu0 %v818
    %v820 = vpop.xlane.xlu0 %819
    %v821 = vsel %vm802, %v792, -inf
    %822 = vmax.xlane.f32.xlu0 %v821
    %v823 = vpop.xlane.xlu0 %822
    %v824 = vsel %vm802, %v793, -inf
    %825 = vmax.xlane.f32.xlu0 %v824
    %v826 = vpop.xlane.xlu0 %825
    %v827 = vsel %vm802, %v794, -inf
    %828 = vmax.xlane.f32.xlu0 %v827
    %v829 = vpop.xlane.xlu0 %828
    %v830 = vsel %vm802, %v795, -inf
    %831 = vmax.xlane.f32.xlu0 %v830
    %v832 = vpop.xlane.xlu0 %831
    %v833 = vsel %vm802, %v796, -inf
    %834 = vmax.xlane.f32.xlu0 %v833
    %v835 = vpop.xlane.xlu0 %834
    %v836 = vsel %vm802, %v797, -inf
    %837 = vmax.xlane.f32.xlu0 %v836
    %v838 = vpop.xlane.xlu0 %837
    %v839 = vsel %vm802, %v798, -inf
    %840 = vmax.xlane.f32.xlu0 %v839
    %v841 = vpop.xlane.xlu0 %840
    %v842 = vsel %vm802, %v799, -inf
    %843 = vmax.xlane.f32.xlu0 %v842
    %v844 = vpop.xlane.xlu0 %843
    %v845 = vsel %vm802, %v800, -inf
    %846 = vmax.xlane.f32.xlu0 %v845
    %v847 = vpop.xlane.xlu0 %846
    %v848 = vsel %vm802, %v801, -inf
    %849 = vmax.xlane.f32.xlu0 %v848
    %v850 = vpop.xlane.xlu0 %849
    %v851 = vsub.f32 %v786, %v805
    %v852 = vsub.f32 %v787, %v808
    %v853 = vsub.f32 %v788, %v811
    %v854 = vsub.f32 %v789, %v814
    %v855 = vsub.f32 %v790, %v817
    %v856 = vsub.f32 %v791, %v820
    %v857 = vsub.f32 %v792, %v823
    %v858 = vsub.f32 %v793, %v826
    %v859 = vsub.f32 %v794, %v829
    %v860 = vsub.f32 %v795, %v832
    %v861 = vsub.f32 %v796, %v835
    %v862 = vsub.f32 %v797, %v838
    %v863 = vsub.f32 %v798, %v841
    %v864 = vsub.f32 %v799, %v844
    %v865 = vsub.f32 %v800, %v847
    %v866 = vsub.f32 %v801, %v850
    %v867 = vmul.f32 %v851, 1.442695
    %v868 = vpow.pop %v867
    %v869 = vmul.f32 %v852, 1.442695
    %v870 = vpow.pop %v869
    %v871 = vmul.f32 %v853, 1.442695
    %v872 = vpow.pop %v871
    %v873 = vmul.f32 %v854, 1.442695
    %v874 = vpow.pop %v873
    %v875 = vmul.f32 %v855, 1.442695
    %v876 = vpow.pop %v875
    %v877 = vmul.f32 %v856, 1.442695
    %v878 = vpow.pop %v877
    %v879 = vmul.f32 %v857, 1.442695
    %v880 = vpow.pop %v879
    %v881 = vmul.f32 %v858, 1.442695
    %v882 = vpow.pop %v881
    %v883 = vmul.f32 %v859, 1.442695
    %v884 = vpow.pop %v883
    %v885 = vmul.f32 %v860, 1.442695
    %v886 = vpow.pop %v885
    %v887 = vmul.f32 %v861, 1.442695
    %v888 = vpow.pop %v887
    %v889 = vmul.f32 %v862, 1.442695
    %v890 = vpow.pop %v889
    %v891 = vmul.f32 %v863, 1.442695
    %v892 = vpow.pop %v891
    %v893 = vmul.f32 %v864, 1.442695
    %v894 = vpow.pop %v893
    %v895 = vmul.f32 %v865, 1.442695
    %v896 = vpow.pop %v895
    %v897 = vmul.f32 %v866, 1.442695
    %v898 = vpow.pop %v897
    %v899 = vsel %vm802, %v868, 0.0
    %900 = vadd.xlane.f32.xlu0 %v899
    %v901 = vpop.xlane.xlu0 %900
    %v902 = vsel %vm802, %v870, 0.0
    %903 = vadd.xlane.f32.xlu0 %v902
    %v904 = vpop.xlane.xlu0 %903
    %v905 = vsel %vm802, %v872, 0.0
    %906 = vadd.xlane.f32.xlu0 %v905
    %v907 = vpop.xlane.xlu0 %906
    %v908 = vsel %vm802, %v874, 0.0
    %909 = vadd.xlane.f32.xlu0 %v908
    %v910 = vpop.xlane.xlu0 %909
    %v911 = vsel %vm802, %v876, 0.0
    %912 = vadd.xlane.f32.xlu0 %v911
    %v913 = vpop.xlane.xlu0 %912
    %v914 = vsel %vm802, %v878, 0.0
    %915 = vadd.xlane.f32.xlu0 %v914
    %v916 = vpop.xlane.xlu0 %915
    %v917 = vsel %vm802, %v880, 0.0
    %918 = vadd.xlane.f32.xlu0 %v917
    %v919 = vpop.xlane.xlu0 %918
    %v920 = vsel %vm802, %v882, 0.0
    %921 = vadd.xlane.f32.xlu0 %v920
    %v922 = vpop.xlane.xlu0 %921
    %v923 = vsel %vm802, %v884, 0.0
    %924 = vadd.xlane.f32.xlu0 %v923
    %v925 = vpop.xlane.xlu0 %924
    %v926 = vsel %vm802, %v886, 0.0
    %927 = vadd.xlane.f32.xlu0 %v926
    %v928 = vpop.xlane.xlu0 %927
    %v929 = vsel %vm802, %v888, 0.0
    %930 = vadd.xlane.f32.xlu0 %v929
    %v931 = vpop.xlane.xlu0 %930
    %v932 = vsel %vm802, %v890, 0.0
    %933 = vadd.xlane.f32.xlu0 %v932
    %v934 = vpop.xlane.xlu0 %933
    %v935 = vsel %vm802, %v892, 0.0
    %936 = vadd.xlane.f32.xlu0 %v935
    %v937 = vpop.xlane.xlu0 %936
    %v938 = vsel %vm802, %v894, 0.0
    %939 = vadd.xlane.f32.xlu0 %v938
    %v940 = vpop.xlane.xlu0 %939
    %v941 = vsel %vm802, %v896, 0.0
    %942 = vadd.xlane.f32.xlu0 %v941
    %v943 = vpop.xlane.xlu0 %942
    %v944 = vsel %vm802, %v898, 0.0
    %945 = vadd.xlane.f32.xlu0 %v944
    %v946 = vpop.xlane.xlu0 %945
    %v947 = vrcp.pop %v901
    %v948 = vrcp.pop %v904
    %v949 = vrcp.pop %v907
    %v950 = vrcp.pop %v910
    %v951 = vrcp.pop %v913
    %v952 = vrcp.pop %v916
    %v953 = vrcp.pop %v919
    %v954 = vrcp.pop %v922
    %v955 = vrcp.pop %v925
    %v956 = vrcp.pop %v928
    %v957 = vrcp.pop %v931
    %v958 = vrcp.pop %v934
    %v959 = vrcp.pop %v937
    %v960 = vrcp.pop %v940
    %v961 = vrcp.pop %v943
    %v962 = vrcp.pop %v946
    %v963 = vmul.f32 %v868, %v947
    %v964 = vmul.f32 %v870, %v948
    %v965 = vmul.f32 %v872, %v949
    %v966 = vmul.f32 %v874, %v950
    %v967 = vmul.f32 %v876, %v951
    %v968 = vmul.f32 %v878, %v952
    %v969 = vmul.f32 %v880, %v953
    %v970 = vmul.f32 %v882, %v954
    %v971 = vmul.f32 %v884, %v955
    %v972 = vmul.f32 %v886, %v956
    %v973 = vmul.f32 %v888, %v957
    %v974 = vmul.f32 %v890, %v958
    %v975 = vmul.f32 %v892, %v959
    %v976 = vmul.f32 %v894, %v960
    %v977 = vmul.f32 %v896, %v961
    %v978 = vmul.f32 %v898, %v962
    %v979 = vpack.c.bf16 %v964, %v963
    %v980 = vpack.c.bf16 %v966, %v965
    %v981 = vpack.c.bf16 %v968, %v967
    %v982 = vpack.c.bf16 %v970, %v969
    %v983 = vpack.c.bf16 %v972, %v971
    %v984 = vpack.c.bf16 %v974, %v973
    %v985 = vpack.c.bf16 %v976, %v975
    %v986 = vpack.c.bf16 %v978, %v977
    %v987 = vpack.c.bf16 %v604, %v601
    %v988 = vpack.c.bf16 %v612, %v609
    %v990 = vsel %vm802, %v979, 0
    %v993 = vsel %vm802, %v980, 0
    %v996 = vsel %vm802, %v981, 0
    %v999 = vsel %vm802, %v982, 0
    %v1002 = vsel %vm802, %v983, 0
    %v1005 = vsel %vm802, %v984, 0
    %v1008 = vsel %vm802, %v985, 0
    %v1011 = vsel %vm802, %v986, 0
    %1013 = vmatprep.subr.bf16.mxu0 0
    %1014 = vmatpush1.bf16.msra.mxu0 0
    %1015 = vmatprep.subr.bf16.mxu0 0
    %1016 = vmatpush1.bf16.msra.mxu0 0
    %1017 = vmatprep.subr.bf16.mxu0 0
    %1018 = vmatpush1.bf16.msra.mxu0 0
    %1019 = vmatprep.subr.bf16.mxu0 0
    %1020 = vmatpush1.bf16.msra.mxu0 0
    %1021 = vmatprep.subr.bf16.mxu0 0
    %1022 = vmatpush1.bf16.msra.mxu0 0
    %1023 = vmatprep.subr.bf16.mxu0 0
    %1024 = vmatpush1.bf16.msra.mxu0 0
    %1025 = vmatprep.subr.bf16.mxu0 0
    %1026 = vmatpush1.bf16.msra.mxu0 %v988
    %1027 = vmatprep.subr.bf16.mxu0 0
    %1028 = vmatpush1.bf16.msra.mxu0 %v987
    %1029 = vmatprep.subr.bf16.mxu0 0
    %1030 = vmatpush2.bf16.msra.mxu0 0
    %1031 = vmatprep.subr.bf16.mxu0 0
    %1032 = vmatpush2.bf16.msra.mxu0 0
    %1033 = vmatprep.subr.bf16.mxu0 0
    %1034 = vmatpush2.bf16.msra.mxu0 0
    %1035 = vmatprep.subr.bf16.mxu0 0
    %1036 = vmatpush2.bf16.msra.mxu0 0
    %1037 = vmatprep.subr.bf16.mxu0 0
    %1038 = vmatpush2.bf16.msra.mxu0 0
    %1039 = vmatprep.subr.bf16.mxu0 0
    %1040 = vmatpush2.bf16.msra.mxu0 0
    %1041 = vmatprep.subr.bf16.mxu0 0
    %1042 = vmatpush2.bf16.msra.mxu0 0
    %1043 = vmatprep.subr.bf16.mxu0 0
    %1044 = vmatpush2.bf16.msra.mxu0 0
    %1045 = vmatprep.mubr.bf16.mxu0 0
    %1046 = vmatmul.mubr.bf16.gmra.mxu0 %v990
    %v1047 = vpop.f32.mrf.mxu0
    %v1048 = vadd.f32 0.0, %v1047
    %v1049 = vpop.f32.mrf.mxu0
    %v1050 = vpop.f32.mrf.mxu0
    %v1051 = vadd.f32 0.0, %v1050
    %v1052 = vpop.f32.mrf.mxu0
    %1053 = vmatprep.mubr.bf16.mxu0 0
    %1054 = vmatmul.mubr.bf16.gmra.mxu0 %v993
    %v1055 = vpop.f32.mrf.mxu0
    %v1056 = vadd.f32 0.0, %v1055
    %v1057 = vpop.f32.mrf.mxu0
    %v1058 = vpop.f32.mrf.mxu0
    %v1059 = vadd.f32 0.0, %v1058
    %v1060 = vpop.f32.mrf.mxu0
    %1061 = vmatprep.mubr.bf16.mxu0 0
    %1062 = vmatmul.mubr.bf16.gmra.mxu0 %v996
    %v1063 = vpop.f32.mrf.mxu0
    %v1064 = vadd.f32 0.0, %v1063
    %v1065 = vpop.f32.mrf.mxu0
    %v1066 = vpop.f32.mrf.mxu0
    %v1067 = vadd.f32 0.0, %v1066
    %v1068 = vpop.f32.mrf.mxu0
    %1069 = vmatprep.mubr.bf16.mxu0 0
    %1070 = vmatmul.mubr.bf16.gmra.mxu0 %v999
    %v1071 = vpop.f32.mrf.mxu0
    %v1072 = vadd.f32 0.0, %v1071
    %v1073 = vpop.f32.mrf.mxu0
    %v1074 = vpop.f32.mrf.mxu0
    %v1075 = vadd.f32 0.0, %v1074
    %v1076 = vpop.f32.mrf.mxu0
    %1077 = vmatprep.mubr.bf16.mxu0 0
    %1078 = vmatmul.mubr.bf16.gmra.mxu0 %v1002
    %v1079 = vpop.f32.mrf.mxu0
    %v1080 = vadd.f32 0.0, %v1079
    %v1081 = vpop.f32.mrf.mxu0
    %v1082 = vpop.f32.mrf.mxu0
    %v1083 = vadd.f32 0.0, %v1082
    %v1084 = vpop.f32.mrf.mxu0
    %1085 = vmatprep.mubr.bf16.mxu0 0
    %1086 = vmatmul.mubr.bf16.gmra.mxu0 %v1005
    %v1087 = vpop.f32.mrf.mxu0
    %v1088 = vadd.f32 0.0, %v1087
    %v1089 = vpop.f32.mrf.mxu0
    %v1090 = vpop.f32.mrf.mxu0
    %v1091 = vadd.f32 0.0, %v1090
    %v1092 = vpop.f32.mrf.mxu0
    %1093 = vmatprep.mubr.bf16.mxu0 0
    %1094 = vmatmul.mubr.bf16.gmra.mxu0 %v1008
    %v1095 = vpop.f32.mrf.mxu0
    %v1096 = vadd.f32 0.0, %v1095
    %v1097 = vpop.f32.mrf.mxu0
    %v1098 = vpop.f32.mrf.mxu0
    %v1099 = vadd.f32 0.0, %v1098
    %v1100 = vpop.f32.mrf.mxu0
    %1101 = vmatprep.mubr.bf16.mxu0 0
    %1102 = vmatmul.mubr.bf16.gmra.mxu0 %v1011
    %v1103 = vpop.f32.mrf.mxu0
    %v1104 = vadd.f32 0.0, %v1103
    %v1105 = vpop.f32.mrf.mxu0
    %v1106 = vpop.f32.mrf.mxu0
    %v1107 = vadd.f32 0.0, %v1106
    %v1108 = vpop.f32.mrf.mxu0
    %1109 = vdwg.mxu0
    %v1110 = vmul.f32 %v1048, %v615
    %v1111 = vmul.f32 %v1051, %v616
    %v1112 = vmul.f32 %v1056, %v617
    %v1113 = vmul.f32 %v1059, %v618
    %v1114 = vmul.f32 %v1064, %v619
    %v1115 = vmul.f32 %v1067, %v620
    %v1116 = vmul.f32 %v1072, %v621
    %v1117 = vmul.f32 %v1075, %v622
    %v1118 = vmul.f32 %v1080, %v623
    %v1119 = vmul.f32 %v1083, %v624
    %v1120 = vmul.f32 %v1088, %v625
    %v1121 = vmul.f32 %v1091, %v626
    %v1122 = vmul.f32 %v1096, %v627
    %v1123 = vmul.f32 %v1099, %v628
    %v1124 = vmul.f32 %v1104, %v629
    %v1125 = vmul.f32 %v1107, %v630
    %v1126 = vadd.f32 %v1110, %v1114
    %v1127 = vadd.f32 %v1111, %v1115
    %v1128 = vadd.f32 %v1112, %v1116
    %v1129 = vadd.f32 %v1113, %v1117
    %v1130 = vadd.f32 %v1126, %v1118
    %v1131 = vadd.f32 %v1127, %v1119
    %v1132 = vadd.f32 %v1128, %v1120
    %v1133 = vadd.f32 %v1129, %v1121
    %v1134 = vadd.f32 %v1130, %v1122
    %v1135 = vadd.f32 %v1131, %v1123
    %v1136 = vadd.f32 %v1132, %v1124
    %v1137 = vadd.f32 %v1133, %v1125
    %v1138 = vpack.c.bf16 %v1135, %v1134
    %v1139 = vpack.c.bf16 %v1137, %v1136
    %v1140 = vld [vmem:[#allocation8] sm:$0xf]
    %v1141 = vld [vmem:[#allocation8 + $0x4] sm:$0xf]
    %v1142 = vld [vmem:[#allocation8 + $0x8] sm:$0xf]
    %v1143 = vld [vmem:[#allocation8 + $0xc] sm:$0xf]
    %v1144 = vld [vmem:[#allocation8 + $0x10] sm:$0xf]
    %v1145 = vld [vmem:[#allocation8 + $0x14] sm:$0xf]
    %v1146 = vld [vmem:[#allocation8 + $0x18] sm:$0xf]
    %v1147 = vld [vmem:[#allocation8 + $0x1c] sm:$0xf]
    %v1148 = vld [vmem:[#allocation8 + $0x20] sm:$0xf]
    %v1149 = vld [vmem:[#allocation8 + $0x24] sm:$0xf]
    %v1150 = vld [vmem:[#allocation8 + $0x28] sm:$0xf]
    %v1151 = vld [vmem:[#allocation8 + $0x2c] sm:$0xf]
    %v1152 = vld [vmem:[#allocation8 + $0x30] sm:$0xf]
    %v1153 = vld [vmem:[#allocation8 + $0x34] sm:$0xf]
    %v1154 = vld [vmem:[#allocation8 + $0x38] sm:$0xf]
    %v1155 = vld [vmem:[#allocation8 + $0x3c] sm:$0xf]
    %v1156 = vld [vmem:[%s13] sm:$0x1]
    %v1158 = vlaneseq
    %v1159 = vshrl.u32 %v1158, 7
    %v1160 = vsub.s32 0, %v1159
    %v1161 = vrot.slane %v1156, %v1160
    %v1179 = vunpack.c.l.b16 %v1140
    %v1180 = vunpack.c.l.b16 %v1141
    %v1181 = vunpack.c.l.b16 %v1142
    %v1182 = vunpack.c.l.b16 %v1143
    %v1183 = vunpack.c.l.b16 %v1144
    %v1184 = vunpack.c.l.b16 %v1145
    %v1185 = vunpack.c.l.b16 %v1146
    %v1186 = vunpack.c.l.b16 %v1147
    %v1187 = vunpack.c.l.b16 %v1148
    %v1188 = vunpack.c.l.b16 %v1149
    %v1189 = vunpack.c.l.b16 %v1150
    %v1190 = vunpack.c.l.b16 %v1151
    %v1191 = vunpack.c.l.b16 %v1152
    %v1192 = vunpack.c.l.b16 %v1153
    %v1193 = vunpack.c.l.b16 %v1154
    %v1194 = vunpack.c.l.b16 %v1155
    %v1195 = vpack.c.b16 %v1180, %v1179
    %v1196 = vpack.c.b16 %v1182, %v1181
    %v1197 = vpack.c.b16 %v1184, %v1183
    %v1198 = vpack.c.b16 %v1186, %v1185
    %v1199 = vpack.c.b16 %v1188, %v1187
    %v1200 = vpack.c.b16 %v1190, %v1189
    %v1201 = vpack.c.b16 %v1192, %v1191
    %v1202 = vpack.c.b16 %v1194, %v1193
    %1211 = vmatprep.subr.bf16.mxu0 0
    %1212 = vmatpush1.bf16.msra.mxu0 %v1202
    %1213 = vmatprep.subr.bf16.mxu0 0
    %1214 = vmatpush1.bf16.msra.mxu0 %v1201
    %1215 = vmatprep.subr.bf16.mxu0 0
    %1216 = vmatpush1.bf16.msra.mxu0 %v1200
    %1217 = vmatprep.subr.bf16.mxu0 0
    %1218 = vmatpush1.bf16.msra.mxu0 %v1199
    %1219 = vmatprep.subr.bf16.mxu0 0
    %1220 = vmatpush1.bf16.msra.mxu0 %v1198
    %1221 = vmatprep.subr.bf16.mxu0 0
    %1222 = vmatpush1.bf16.msra.mxu0 %v1197
    %1223 = vmatprep.subr.bf16.mxu0 0
    %1224 = vmatpush1.bf16.msra.mxu0 %v1196
    %1225 = vmatprep.subr.bf16.mxu0 0
    %1226 = vmatpush1.bf16.msra.mxu0 %v1195
    %1227 = vmatprep.subr.bf16.mxu0 0
    %1228 = vmatpush2.bf16.msra.mxu0 0
    %1229 = vmatprep.subr.bf16.mxu0 0
    %1230 = vmatpush2.bf16.msra.mxu0 0
    %1231 = vmatprep.subr.bf16.mxu0 0
    %1232 = vmatpush2.bf16.msra.mxu0 0
    %1233 = vmatprep.subr.bf16.mxu0 0
    %1234 = vmatpush2.bf16.msra.mxu0 0
    %1235 = vmatprep.subr.bf16.mxu0 0
    %1236 = vmatpush2.bf16.msra.mxu0 0
    %1237 = vmatprep.subr.bf16.mxu0 0
    %1238 = vmatpush2.bf16.msra.mxu0 0
    %1239 = vmatprep.subr.bf16.mxu0 0
    %1240 = vmatpush2.bf16.msra.mxu0 0
    %1241 = vmatprep.subr.bf16.mxu0 0
    %1242 = vmatpush2.bf16.msra.mxu0 0
    %1243 = vmatprep.mubr.bf16.mxu0 0
    %1244 = vmatmul.mubr.bf16.gmra.mxu0 %v1138
    %v1245 = vpop.f32.mrf.mxu0
    %v1246 = vadd.f32 %v1161, %v1245
    %v1247 = vpop.f32.mrf.mxu0
    %v1248 = vpop.f32.mrf.mxu0
    %v1249 = vadd.f32 %v1161, %v1248
    %v1250 = vpop.f32.mrf.mxu0
    %1251 = vmatprep.mubr.bf16.mxu0 0
    %1252 = vmatmul.mubr.bf16.gmra.mxu0 %v1139
    %v1253 = vpop.f32.mrf.mxu0
    %v1254 = vadd.f32 %v1161, %v1253
    %v1255 = vpop.f32.mrf.mxu0
    %v1256 = vpop.f32.mrf.mxu0
    %v1257 = vadd.f32 %v1161, %v1256
    %v1258 = vpop.f32.mrf.mxu0
    %1259 = vdwg.mxu0
    %v1260 = vadd.f32 %v249, %v1246
    %v1261 = vadd.f32 %v250, %v1249
    %v1262 = vadd.f32 %v251, %v1254
    %v1263 = vadd.f32 %v252, %v1257
    %v1264 = vld [vmem:[%s14] sm:$0x1]
    %v1265 = vld [vmem:[%s15] sm:$0x1]
    %1266 = vadd.xlane.f32.xlu0 %v1260
    %v1267 = vpop.xlane.xlu0 %1266
    %1268 = vadd.xlane.f32.xlu0 %v1261
    %v1269 = vpop.xlane.xlu0 %1268
    %1270 = vadd.xlane.f32.xlu0 %v1262
    %v1271 = vpop.xlane.xlu0 %1270
    %1272 = vadd.xlane.f32.xlu0 %v1263
    %v1273 = vpop.xlane.xlu0 %1272
    %v1274 = vmul.f32 %v1267, 0.03125
    %v1275 = vmul.f32 %v1269, 0.03125
    %v1276 = vmul.f32 %v1271, 0.03125
    %v1277 = vmul.f32 %v1273, 0.03125
    %v1278 = vsub.f32 %v1260, %v1274
    %v1279 = vsub.f32 %v1261, %v1275
    %v1280 = vsub.f32 %v1262, %v1276
    %v1281 = vsub.f32 %v1263, %v1277
    %v1282 = vmul.f32 %v1278, %v178
    %v1283 = vmul.f32 %v1279, %v178
    %v1284 = vmul.f32 %v1280, %v178
    %v1285 = vmul.f32 %v1281, %v178
    %v1286 = vmul.f32 %v1282, %v1282
    %v1287 = vmul.f32 %v1283, %v1283
    %v1288 = vmul.f32 %v1284, %v1284
    %v1289 = vmul.f32 %v1285, %v1285
    %1290 = vadd.xlane.f32.xlu0 %v1286
    %v1291 = vpop.xlane.xlu0 %1290
    %1292 = vadd.xlane.f32.xlu0 %v1287
    %v1293 = vpop.xlane.xlu0 %1292
    %1294 = vadd.xlane.f32.xlu0 %v1288
    %v1295 = vpop.xlane.xlu0 %1294
    %1296 = vadd.xlane.f32.xlu0 %v1289
    %v1297 = vpop.xlane.xlu0 %1296
    %v1298 = vmul.f32 %v1291, 0.03125
    %v1299 = vmul.f32 %v1293, 0.03125
    %v1300 = vmul.f32 %v1295, 0.03125
    %v1301 = vmul.f32 %v1297, 0.03125
    %v1302 = vadd.f32 %v1298, 1e-12
    %v1303 = vadd.f32 %v1299, 1e-12
    %v1304 = vadd.f32 %v1300, 1e-12
    %v1305 = vadd.f32 %v1301, 1e-12
    %v1306 = vrsqrt.pop %v1302
    %v1307 = vrsqrt.pop %v1303
    %v1308 = vrsqrt.pop %v1304
    %v1309 = vrsqrt.pop %v1305
    %v1310 = vmul.f32 %v1282, %v1306
    %v1311 = vmul.f32 %v1283, %v1307
    %v1312 = vmul.f32 %v1284, %v1308
    %v1313 = vmul.f32 %v1285, %v1309
    %v1315 = vlaneseq
    %v1316 = vshrl.u32 %v1315, 7
    %v1317 = vsub.s32 0, %v1316
    %v1318 = vrot.slane %v1264, %v1317
    %v1320 = vmul.f32 %v1310, %v1318
    %v1321 = vmul.f32 %v1311, %v1318
    %v1322 = vmul.f32 %v1312, %v1318
    %v1323 = vmul.f32 %v1313, %v1318
    %v1325 = vlaneseq
    %v1326 = vshrl.u32 %v1325, 7
    %v1327 = vsub.s32 0, %v1326
    %v1328 = vrot.slane %v1265, %v1327
    %v1330 = vadd.f32 %v1320, %v1328
    %v1331 = vadd.f32 %v1321, %v1328
    %v1332 = vadd.f32 %v1322, %v1328
    %v1333 = vadd.f32 %v1323, %v1328
    %v1334 = vpack.c.bf16 %v1331, %v1330
    %v1335 = vpack.c.bf16 %v1333, %v1332
    %v1336 = vld [vmem:[#allocation10] sm:$0xf]
    %v1337 = vld [vmem:[#allocation10 + $0x4] sm:$0xf]
    %v1338 = vld [vmem:[#allocation10 + $0x8] sm:$0xf]
    %v1339 = vld [vmem:[#allocation10 + $0xc] sm:$0xf]
    %v1340 = vld [vmem:[#allocation10 + $0x10] sm:$0xf]
    %v1341 = vld [vmem:[#allocation10 + $0x14] sm:$0xf]
    %v1342 = vld [vmem:[#allocation10 + $0x18] sm:$0xf]
    %v1343 = vld [vmem:[#allocation10 + $0x1c] sm:$0xf]
    %v1344 = vld [vmem:[#allocation10 + $0x20] sm:$0xf]
    %v1345 = vld [vmem:[#allocation10 + $0x24] sm:$0xf]
    %v1346 = vld [vmem:[#allocation10 + $0x28] sm:$0xf]
    %v1347 = vld [vmem:[#allocation10 + $0x2c] sm:$0xf]
    %v1348 = vld [vmem:[#allocation10 + $0x30] sm:$0xf]
    %v1349 = vld [vmem:[#allocation10 + $0x34] sm:$0xf]
    %v1350 = vld [vmem:[#allocation10 + $0x38] sm:$0xf]
    %v1351 = vld [vmem:[#allocation10 + $0x3c] sm:$0xf]
    %v1352 = vld [vmem:[%s17] sm:$0x1]
    %v1354 = vlaneseq
    %v1355 = vshrl.u32 %v1354, 7
    %v1356 = vsub.s32 0, %v1355
    %v1357 = vrot.slane %v1352, %v1356
    %v1375 = vunpack.c.l.b16 %v1336
    %v1376 = vunpack.c.l.b16 %v1337
    %v1377 = vunpack.c.l.b16 %v1338
    %v1378 = vunpack.c.l.b16 %v1339
    %v1379 = vunpack.c.l.b16 %v1340
    %v1380 = vunpack.c.l.b16 %v1341
    %v1381 = vunpack.c.l.b16 %v1342
    %v1382 = vunpack.c.l.b16 %v1343
    %v1383 = vunpack.c.l.b16 %v1344
    %v1384 = vunpack.c.l.b16 %v1345
    %v1385 = vunpack.c.l.b16 %v1346
    %v1386 = vunpack.c.l.b16 %v1347
    %v1387 = vunpack.c.l.b16 %v1348
    %v1388 = vunpack.c.l.b16 %v1349
    %v1389 = vunpack.c.l.b16 %v1350
    %v1390 = vunpack.c.l.b16 %v1351
    %v1391 = vpack.c.b16 %v1376, %v1375
    %v1392 = vpack.c.b16 %v1378, %v1377
    %v1393 = vpack.c.b16 %v1380, %v1379
    %v1394 = vpack.c.b16 %v1382, %v1381
    %v1395 = vpack.c.b16 %v1384, %v1383
    %v1396 = vpack.c.b16 %v1386, %v1385
    %v1397 = vpack.c.b16 %v1388, %v1387
    %v1398 = vpack.c.b16 %v1390, %v1389
    %1407 = vmatprep.subr.bf16.mxu0 0
    %1408 = vmatpush1.bf16.msra.mxu0 %v1398
    %1409 = vmatprep.subr.bf16.mxu0 0
    %1410 = vmatpush1.bf16.msra.mxu0 %v1397
    %1411 = vmatprep.subr.bf16.mxu0 0
    %1412 = vmatpush1.bf16.msra.mxu0 %v1396
    %1413 = vmatprep.subr.bf16.mxu0 0
    %1414 = vmatpush1.bf16.msra.mxu0 %v1395
    %1415 = vmatprep.subr.bf16.mxu0 0
    %1416 = vmatpush1.bf16.msra.mxu0 %v1394
    %1417 = vmatprep.subr.bf16.mxu0 0
    %1418 = vmatpush1.bf16.msra.mxu0 %v1393
    %1419 = vmatprep.subr.bf16.mxu0 0
    %1420 = vmatpush1.bf16.msra.mxu0 %v1392
    %1421 = vmatprep.subr.bf16.mxu0 0
    %1422 = vmatpush1.bf16.msra.mxu0 %v1391
    %1423 = vmatprep.subr.bf16.mxu0 0
    %1424 = vmatpush2.bf16.msra.mxu0 0
    %1425 = vmatprep.subr.bf16.mxu0 0
    %1426 = vmatpush2.bf16.msra.mxu0 0
    %1427 = vmatprep.subr.bf16.mxu0 0
    %1428 = vmatpush2.bf16.msra.mxu0 0
    %1429 = vmatprep.subr.bf16.mxu0 0
    %1430 = vmatpush2.bf16.msra.mxu0 0
    %1431 = vmatprep.subr.bf16.mxu0 0
    %1432 = vmatpush2.bf16.msra.mxu0 0
    %1433 = vmatprep.subr.bf16.mxu0 0
    %1434 = vmatpush2.bf16.msra.mxu0 0
    %1435 = vmatprep.subr.bf16.mxu0 0
    %1436 = vmatpush2.bf16.msra.mxu0 0
    %1437 = vmatprep.subr.bf16.mxu0 0
    %1438 = vmatpush2.bf16.msra.mxu0 0
    %1439 = vmatprep.mubr.bf16.mxu0 0
    %1440 = vmatmul.mubr.bf16.gmra.mxu0 %v1334
    %v1441 = vpop.f32.mrf.mxu0
    %v1442 = vadd.f32 %v1357, %v1441
    %v1443 = vpop.f32.mrf.mxu0
    %v1444 = vpop.f32.mrf.mxu0
    %v1445 = vadd.f32 %v1357, %v1444
    %v1446 = vpop.f32.mrf.mxu0
    %1447 = vmatprep.mubr.bf16.mxu0 0
    %1448 = vmatmul.mubr.bf16.gmra.mxu0 %v1335
    %v1449 = vpop.f32.mrf.mxu0
    %v1450 = vadd.f32 %v1357, %v1449
    %v1451 = vpop.f32.mrf.mxu0
    %v1452 = vpop.f32.mrf.mxu0
    %v1453 = vadd.f32 %v1357, %v1452
    %v1454 = vpop.f32.mrf.mxu0
    %1455 = vdwg.mxu0
    %v1456 = vmul.f32 %v1442, %v1442
    %v1457 = vmul.f32 %v1445, %v1445
    %v1458 = vmul.f32 %v1450, %v1450
    %v1459 = vmul.f32 %v1453, %v1453
    %v1460 = vmul.f32 %v1442, %v1456
    %v1461 = vmul.f32 %v1445, %v1457
    %v1462 = vmul.f32 %v1450, %v1458
    %v1463 = vmul.f32 %v1453, %v1459
    %v1464 = vmul.f32 %v1460, 0.044715
    %v1465 = vmul.f32 %v1461, 0.044715
    %v1466 = vmul.f32 %v1462, 0.044715
    %v1467 = vmul.f32 %v1463, 0.044715
    %v1468 = vadd.f32 %v1442, %v1464
    %v1469 = vadd.f32 %v1445, %v1465
    %v1470 = vadd.f32 %v1450, %v1466
    %v1471 = vadd.f32 %v1453, %v1467
    %v1472 = vmul.f32 %v1468, 0.7978846
    %v1473 = vmul.f32 %v1469, 0.7978846
    %v1474 = vmul.f32 %v1470, 0.7978846
    %v1475 = vmul.f32 %v1471, 0.7978846
    %v1476 = vtanh.pop %v1472
    %v1477 = vtanh.pop %v1473
    %v1478 = vtanh.pop %v1474
    %v1479 = vtanh.pop %v1475
    %v1480 = vadd.f32 %v1476, 1.0
    %v1481 = vadd.f32 %v1477, 1.0
    %v1482 = vadd.f32 %v1478, 1.0
    %v1483 = vadd.f32 %v1479, 1.0
    %v1484 = vmul.f32 %v1480, 0.5
    %v1485 = vmul.f32 %v1481, 0.5
    %v1486 = vmul.f32 %v1482, 0.5
    %v1487 = vmul.f32 %v1483, 0.5
    %v1488 = vmul.f32 %v1442, %v1484
    %v1489 = vmul.f32 %v1445, %v1485
    %v1490 = vmul.f32 %v1450, %v1486
    %v1491 = vmul.f32 %v1453, %v1487
    %v1492 = vpack.c.bf16 %v1489, %v1488
    %v1493 = vpack.c.bf16 %v1491, %v1490
    %v1494 = vld [vmem:[#allocation11] sm:$0xf]
    %v1495 = vld [vmem:[#allocation11 + $0x4] sm:$0xf]
    %v1496 = vld [vmem:[#allocation11 + $0x8] sm:$0xf]
    %v1497 = vld [vmem:[#allocation11 + $0xc] sm:$0xf]
    %v1498 = vld [vmem:[#allocation11 + $0x10] sm:$0xf]
    %v1499 = vld [vmem:[#allocation11 + $0x14] sm:$0xf]
    %v1500 = vld [vmem:[#allocation11 + $0x18] sm:$0xf]
    %v1501 = vld [vmem:[#allocation11 + $0x1c] sm:$0xf]
    %v1502 = vld [vmem:[#allocation11 + $0x20] sm:$0xf]
    %v1503 = vld [vmem:[#allocation11 + $0x24] sm:$0xf]
    %v1504 = vld [vmem:[#allocation11 + $0x28] sm:$0xf]
    %v1505 = vld [vmem:[#allocation11 + $0x2c] sm:$0xf]
    %v1506 = vld [vmem:[#allocation11 + $0x30] sm:$0xf]
    %v1507 = vld [vmem:[#allocation11 + $0x34] sm:$0xf]
    %v1508 = vld [vmem:[#allocation11 + $0x38] sm:$0xf]
    %v1509 = vld [vmem:[#allocation11 + $0x3c] sm:$0xf]
    %v1510 = vld [vmem:[%s19] sm:$0x1]
    %v1512 = vlaneseq
    %v1513 = vshrl.u32 %v1512, 7
    %v1514 = vsub.s32 0, %v1513
    %v1515 = vrot.slane %v1510, %v1514
    %v1533 = vunpack.c.l.b16 %v1494
    %v1534 = vunpack.c.l.b16 %v1495
    %v1535 = vunpack.c.l.b16 %v1496
    %v1536 = vunpack.c.l.b16 %v1497
    %v1537 = vunpack.c.l.b16 %v1498
    %v1538 = vunpack.c.l.b16 %v1499
    %v1539 = vunpack.c.l.b16 %v1500
    %v1540 = vunpack.c.l.b16 %v1501
    %v1541 = vunpack.c.l.b16 %v1502
    %v1542 = vunpack.c.l.b16 %v1503
    %v1543 = vunpack.c.l.b16 %v1504
    %v1544 = vunpack.c.l.b16 %v1505
    %v1545 = vunpack.c.l.b16 %v1506
    %v1546 = vunpack.c.l.b16 %v1507
    %v1547 = vunpack.c.l.b16 %v1508
    %v1548 = vunpack.c.l.b16 %v1509
    %v1549 = vpack.c.b16 %v1534, %v1533
    %v1550 = vpack.c.b16 %v1536, %v1535
    %v1551 = vpack.c.b16 %v1538, %v1537
    %v1552 = vpack.c.b16 %v1540, %v1539
    %v1553 = vpack.c.b16 %v1542, %v1541
    %v1554 = vpack.c.b16 %v1544, %v1543
    %v1555 = vpack.c.b16 %v1546, %v1545
    %v1556 = vpack.c.b16 %v1548, %v1547
    %1565 = vmatprep.subr.bf16.mxu0 0
    %1566 = vmatpush1.bf16.msra.mxu0 %v1556
    %1567 = vmatprep.subr.bf16.mxu0 0
    %1568 = vmatpush1.bf16.msra.mxu0 %v1555
    %1569 = vmatprep.subr.bf16.mxu0 0
    %1570 = vmatpush1.bf16.msra.mxu0 %v1554
    %1571 = vmatprep.subr.bf16.mxu0 0
    %1572 = vmatpush1.bf16.msra.mxu0 %v1553
    %1573 = vmatprep.subr.bf16.mxu0 0
    %1574 = vmatpush1.bf16.msra.mxu0 %v1552
    %1575 = vmatprep.subr.bf16.mxu0 0
    %1576 = vmatpush1.bf16.msra.mxu0 %v1551
    %1577 = vmatprep.subr.bf16.mxu0 0
    %1578 = vmatpush1.bf16.msra.mxu0 %v1550
    %1579 = vmatprep.subr.bf16.mxu0 0
    %1580 = vmatpush1.bf16.msra.mxu0 %v1549
    %1581 = vmatprep.subr.bf16.mxu0 0
    %1582 = vmatpush2.bf16.msra.mxu0 0
    %1583 = vmatprep.subr.bf16.mxu0 0
    %1584 = vmatpush2.bf16.msra.mxu0 0
    %1585 = vmatprep.subr.bf16.mxu0 0
    %1586 = vmatpush2.bf16.msra.mxu0 0
    %1587 = vmatprep.subr.bf16.mxu0 0
    %1588 = vmatpush2.bf16.msra.mxu0 0
    %1589 = vmatprep.subr.bf16.mxu0 0
    %1590 = vmatpush2.bf16.msra.mxu0 0
    %1591 = vmatprep.subr.bf16.mxu0 0
    %1592 = vmatpush2.bf16.msra.mxu0 0
    %1593 = vmatprep.subr.bf16.mxu0 0
    %1594 = vmatpush2.bf16.msra.mxu0 0
    %1595 = vmatprep.subr.bf16.mxu0 0
    %1596 = vmatpush2.bf16.msra.mxu0 0
    %1597 = vmatprep.mubr.bf16.mxu0 0
    %1598 = vmatmul.mubr.bf16.gmra.mxu0 %v1492
    %v1599 = vpop.f32.mrf.mxu0
    %v1600 = vadd.f32 %v1515, %v1599
    %v1601 = vpop.f32.mrf.mxu0
    %v1602 = vpop.f32.mrf.mxu0
    %v1603 = vadd.f32 %v1515, %v1602
    %v1604 = vpop.f32.mrf.mxu0
    %1605 = vmatprep.mubr.bf16.mxu0 0
    %1606 = vmatmul.mubr.bf16.gmra.mxu0 %v1493
    %v1607 = vpop.f32.mrf.mxu0
    %v1608 = vadd.f32 %v1515, %v1607
    %v1609 = vpop.f32.mrf.mxu0
    %v1610 = vpop.f32.mrf.mxu0
    %v1611 = vadd.f32 %v1515, %v1610
    %v1612 = vpop.f32.mrf.mxu0
    %1613 = vdwg.mxu0
    %v1614 = vadd.f32 %v1330, %v1600
    %v1615 = vadd.f32 %v1331, %v1603
    %v1616 = vadd.f32 %v1332, %v1608
    %v1617 = vadd.f32 %v1333, %v1611
    %v1618 = vld [vmem:[%s20] sm:$0x1]
    %v1619 = vld [vmem:[%s21] sm:$0x1]
    %1620 = vadd.xlane.f32.xlu0 %v1614
    %v1621 = vpop.xlane.xlu0 %1620
    %1622 = vadd.xlane.f32.xlu0 %v1615
    %v1623 = vpop.xlane.xlu0 %1622
    %1624 = vadd.xlane.f32.xlu0 %v1616
    %v1625 = vpop.xlane.xlu0 %1624
    %1626 = vadd.xlane.f32.xlu0 %v1617
    %v1627 = vpop.xlane.xlu0 %1626
    %v1628 = vmul.f32 %v1621, 0.03125
    %v1629 = vmul.f32 %v1623, 0.03125
    %v1630 = vmul.f32 %v1625, 0.03125
    %v1631 = vmul.f32 %v1627, 0.03125
    %v1632 = vsub.f32 %v1614, %v1628
    %v1633 = vsub.f32 %v1615, %v1629
    %v1634 = vsub.f32 %v1616, %v1630
    %v1635 = vsub.f32 %v1617, %v1631
    %v1636 = vmul.f32 %v1632, %v178
    %v1637 = vmul.f32 %v1633, %v178
    %v1638 = vmul.f32 %v1634, %v178
    %v1639 = vmul.f32 %v1635, %v178
    %v1640 = vmul.f32 %v1636, %v1636
    %v1641 = vmul.f32 %v1637, %v1637
    %v1642 = vmul.f32 %v1638, %v1638
    %v1643 = vmul.f32 %v1639, %v1639
    %1644 = vadd.xlane.f32.xlu0 %v1640
    %v1645 = vpop.xlane.xlu0 %1644
    %1646 = vadd.xlane.f32.xlu0 %v1641
    %v1647 = vpop.xlane.xlu0 %1646
    %1648 = vadd.xlane.f32.xlu0 %v1642
    %v1649 = vpop.xlane.xlu0 %1648
    %1650 = vadd.xlane.f32.xlu0 %v1643
    %v1651 = vpop.xlane.xlu0 %1650
    %v1652 = vmul.f32 %v1645, 0.03125
    %v1653 = vmul.f32 %v1647, 0.03125
    %v1654 = vmul.f32 %v1649, 0.03125
    %v1655 = vmul.f32 %v1651, 0.03125
    %v1656 = vadd.f32 %v1652, 1e-12
    %v1657 = vadd.f32 %v1653, 1e-12
    %v1658 = vadd.f32 %v1654, 1e-12
    %v1659 = vadd.f32 %v1655, 1e-12
    %v1660 = vrsqrt.pop %v1656
    %v1661 = vrsqrt.pop %v1657
    %v1662 = vrsqrt.pop %v1658
    %v1663 = vrsqrt.pop %v1659
    %v1664 = vmul.f32 %v1636, %v1660
    %v1665 = vmul.f32 %v1637, %v1661
    %v1666 = vmul.f32 %v1638, %v1662
    %v1667 = vmul.f32 %v1639, %v1663
    %v1669 = vlaneseq
    %v1670 = vshrl.u32 %v1669, 7
    %v1671 = vsub.s32 0, %v1670
    %v1672 = vrot.slane %v1618, %v1671
    %v1674 = vmul.f32 %v1664, %v1672
    %v1675 = vmul.f32 %v1665, %v1672
    %v1676 = vmul.f32 %v1666, %v1672
    %v1677 = vmul.f32 %v1667, %v1672
    %v1679 = vlaneseq
    %v1680 = vshrl.u32 %v1679, 7
    %v1681 = vsub.s32 0, %v1680
    %v1682 = vrot.slane %v1619, %v1681
    %v1684 = vadd.f32 %v1674, %v1682
    %v1685 = vadd.f32 %v1675, %v1682
    %v1686 = vadd.f32 %v1676, %v1682
    %v1687 = vadd.f32 %v1677, %v1682
    %v1688 = vpack.c.bf16 %v1685, %v1684
    %v1689 = vpack.c.bf16 %v1687, %v1686
    %v1690 = vld [vmem:[#allocation13] sm:$0xf]
    %v1691 = vld [vmem:[#allocation13 + $0x4] sm:$0xf]
    %v1692 = vld [vmem:[#allocation13 + $0x8] sm:$0xf]
    %v1693 = vld [vmem:[#allocation13 + $0xc] sm:$0xf]
    %v1694 = vld [vmem:[#allocation13 + $0x10] sm:$0xf]
    %v1695 = vld [vmem:[#allocation13 + $0x14] sm:$0xf]
    %v1696 = vld [vmem:[#allocation13 + $0x18] sm:$0xf]
    %v1697 = vld [vmem:[#allocation13 + $0x1c] sm:$0xf]
    %v1698 = vld [vmem:[#allocation13 + $0x20] sm:$0xf]
    %v1699 = vld [vmem:[#allocation13 + $0x24] sm:$0xf]
    %v1700 = vld [vmem:[#allocation13 + $0x28] sm:$0xf]
    %v1701 = vld [vmem:[#allocation13 + $0x2c] sm:$0xf]
    %v1702 = vld [vmem:[#allocation13 + $0x30] sm:$0xf]
    %v1703 = vld [vmem:[#allocation13 + $0x34] sm:$0xf]
    %v1704 = vld [vmem:[#allocation13 + $0x38] sm:$0xf]
    %v1705 = vld [vmem:[#allocation13 + $0x3c] sm:$0xf]
    %v1706 = vld [vmem:[%s23] sm:$0x1]
    %v1708 = vlaneseq
    %v1709 = vshrl.u32 %v1708, 7
    %v1710 = vsub.s32 0, %v1709
    %v1711 = vrot.slane %v1706, %v1710
    %v1729 = vunpack.c.l.b16 %v1690
    %v1730 = vunpack.c.l.b16 %v1691
    %v1731 = vunpack.c.l.b16 %v1692
    %v1732 = vunpack.c.l.b16 %v1693
    %v1733 = vunpack.c.l.b16 %v1694
    %v1734 = vunpack.c.l.b16 %v1695
    %v1735 = vunpack.c.l.b16 %v1696
    %v1736 = vunpack.c.l.b16 %v1697
    %v1737 = vunpack.c.l.b16 %v1698
    %v1738 = vunpack.c.l.b16 %v1699
    %v1739 = vunpack.c.l.b16 %v1700
    %v1740 = vunpack.c.l.b16 %v1701
    %v1741 = vunpack.c.l.b16 %v1702
    %v1742 = vunpack.c.l.b16 %v1703
    %v1743 = vunpack.c.l.b16 %v1704
    %v1744 = vunpack.c.l.b16 %v1705
    %v1745 = vpack.c.b16 %v1730, %v1729
    %v1746 = vpack.c.b16 %v1732, %v1731
    %v1747 = vpack.c.b16 %v1734, %v1733
    %v1748 = vpack.c.b16 %v1736, %v1735
    %v1749 = vpack.c.b16 %v1738, %v1737
    %v1750 = vpack.c.b16 %v1740, %v1739
    %v1751 = vpack.c.b16 %v1742, %v1741
    %v1752 = vpack.c.b16 %v1744, %v1743
    %1761 = vmatprep.subr.bf16.mxu0 0
    %1762 = vmatpush1.bf16.msra.mxu0 %v1752
    %1763 = vmatprep.subr.bf16.mxu0 0
    %1764 = vmatpush1.bf16.msra.mxu0 %v1751
    %1765 = vmatprep.subr.bf16.mxu0 0
    %1766 = vmatpush1.bf16.msra.mxu0 %v1750
    %1767 = vmatprep.subr.bf16.mxu0 0
    %1768 = vmatpush1.bf16.msra.mxu0 %v1749
    %1769 = vmatprep.subr.bf16.mxu0 0
    %1770 = vmatpush1.bf16.msra.mxu0 %v1748
    %1771 = vmatprep.subr.bf16.mxu0 0
    %1772 = vmatpush1.bf16.msra.mxu0 %v1747
    %1773 = vmatprep.subr.bf16.mxu0 0
    %1774 = vmatpush1.bf16.msra.mxu0 %v1746
    %1775 = vmatprep.subr.bf16.mxu0 0
    %1776 = vmatpush1.bf16.msra.mxu0 %v1745
    %1777 = vmatprep.subr.bf16.mxu0 0
    %1778 = vmatpush2.bf16.msra.mxu0 0
    %1779 = vmatprep.subr.bf16.mxu0 0
    %1780 = vmatpush2.bf16.msra.mxu0 0
    %1781 = vmatprep.subr.bf16.mxu0 0
    %1782 = vmatpush2.bf16.msra.mxu0 0
    %1783 = vmatprep.subr.bf16.mxu0 0
    %1784 = vmatpush2.bf16.msra.mxu0 0
    %1785 = vmatprep.subr.bf16.mxu0 0
    %1786 = vmatpush2.bf16.msra.mxu0 0
    %1787 = vmatprep.subr.bf16.mxu0 0
    %1788 = vmatpush2.bf16.msra.mxu0 0
    %1789 = vmatprep.subr.bf16.mxu0 0
    %1790 = vmatpush2.bf16.msra.mxu0 0
    %1791 = vmatprep.subr.bf16.mxu0 0
    %1792 = vmatpush2.bf16.msra.mxu0 0
    %1793 = vmatprep.mubr.bf16.mxu0 0
    %1794 = vmatmul.mubr.bf16.gmra.mxu0 %v1688
    %v1795 = vpop.f32.mrf.mxu0
    %v1796 = vadd.f32 %v1711, %v1795
    %v1797 = vpop.f32.mrf.mxu0
    %v1798 = vpop.f32.mrf.mxu0
    %v1799 = vadd.f32 %v1711, %v1798
    %v1800 = vpop.f32.mrf.mxu0
    %1801 = vmatprep.mubr.bf16.mxu0 0
    %1802 = vmatmul.mubr.bf16.gmra.mxu0 %v1689
    %v1803 = vpop.f32.mrf.mxu0
    %v1804 = vadd.f32 %v1711, %v1803
    %v1805 = vpop.f32.mrf.mxu0
    %v1806 = vpop.f32.mrf.mxu0
    %v1807 = vadd.f32 %v1711, %v1806
    %v1808 = vpop.f32.mrf.mxu0
    %1809 = vdwg.mxu0
    %v1810 = vld [vmem:[%s2] sm:$0xff]
    %v1811 = vld [vmem:[%s2 + $0x8] sm:$0xff]
    %v1812 = vld [vmem:[%s2 + $0x10] sm:$0xff]
    %v1813 = vld [vmem:[%s2 + $0x18] sm:$0xff]
    %vm1814 = vcmp.gt.f32.partialorder %v1810, 0.5
    %vm1815 = vcmp.gt.f32.partialorder %v1811, 0.5
    %vm1816 = vcmp.gt.f32.partialorder %v1812, 0.5
    %vm1817 = vcmp.gt.f32.partialorder %v1813, 0.5
    %v1818 = vsel %vm1814, 1, 0
    %v1819 = vsel %vm1815, 1, 0
    %v1820 = vsel %vm1816, 1, 0
    %v1821 = vsel %vm1817, 1, 0
    %1822 = vset.pattern.permute.xlu0 0
    %1823 = vperm.xlu0 %1822, %v1818
    %v1824 = vpop.permute.xlu0 %1823
    %1825 = vset.pattern.permute.xlu0 0
    %1826 = vperm.xlu0 %1825, %v1819
    %v1827 = vpop.permute.xlu0 %1826
    %1828 = vset.pattern.permute.xlu0 0
    %1829 = vperm.xlu0 %1828, %v1820
    %v1830 = vpop.permute.xlu0 %1829
    %1831 = vset.pattern.permute.xlu0 0
    %1832 = vperm.xlu0 %1831, %v1821
    %v1833 = vpop.permute.xlu0 %1832
    %vm1834 = vcmp.eq.s32.totalorder %v1824, 1
    %vm1835 = vcmp.eq.s32.totalorder %v1827, 1
    %vm1836 = vcmp.eq.s32.totalorder %v1830, 1
    %vm1837 = vcmp.eq.s32.totalorder %v1833, 1
    %v1838 = vsel %vm1834, %v1796, -1e+09
    %v1839 = vsel %vm1835, %v1799, -1e+09
    %v1840 = vsel %vm1836, %v1804, -1e+09
    %v1841 = vsel %vm1837, %v1807, -1e+09
    %1842 = vst [vmem:[#allocation14] sm:$0xff] %v1838
    %1843 = vst [vmem:[#allocation14 + $0x8] sm:$0xff] %v1839
    %1844 = vst [vmem:[#allocation14 + $0x10] sm:$0xff] %v1840
    %1845 = vst [vmem:[#allocation14 + $0x18] sm:$0xff] %v1841
    // Predicated region
    $region126: #{tpu_custom_call.1} parent=1 // pred_check
      _
    $region127: #{tpu_custom_call.1} parent=1 // pred_check_branch
      %1847 = sbr.rel (0) target = $region129
    $region128: #{tpu_custom_call.1} parent=1 // pred_region
      %s1849 = ssub.s32 512, 512
      %1850 = vsyncadd [#allocation4], %s1849
      %s1851 = sshll.u32 [#allocation14], 4
      %s1852 = int_to_ptr.vmem [resolvable:$true] %s1851
      %1857 = dma.vmem_to_hbm [thread:$0]  %s1852, 512, %s24, [#allocation4], 128, 128, 8
    $region129: #{tpu_custom_call.1} parent=1 // pred_fallthru
      _
    // Predicated region
    $region130: #{tpu_custom_call.1} parent=1 // pred_check
      _
    $region131: #{tpu_custom_call.1} parent=1 // pred_check_branch
      %1859 = sbr.rel (0) target = $region133
    $region132: #{tpu_custom_call.1} parent=1 // pred_region
      %1860 = dma.done [#allocation4], 512
    $region133: #{tpu_custom_call.1} parent=1 // pred_fallthru
      _
    %1861 = vsyncpa [#allocation3], 1
    %1862 = vsyncpa [#allocation6], 1
    %1863 = vsyncpa [#allocation9], 1
    %1864 = vsyncpa [#allocation12], 1
    %1865 = vsyncpa [#allocation4], 1

</llo_original>
